<compile_context>
chip_gen: v5e
topology: v5e:2x2
jax: 0.10.0
libtpu: 0.0.40
codegen_flags: <defaults>
</compile_context>

<pallas_src>
import math
import functools

import jax
import jax.numpy as jnp
import numpy as np
from jax import lax
from jax.experimental import pallas as pl
from jax.experimental.pallas import tpu as pltpu

# ---------------- model hyper-parameters (small, consistent with module) ----
D_MODEL = 32      # embed dim
N_HEAD = 4        # heads per encoder layer
DIM_FF = 64       # feed-forward hidden dim
NUM_LAYERS = 2
VOCAB = 50
SEQ = 8           # sequence length
BATCH = 2
LN_EPS = 1e-5

_W1_LANE_OFF = 128   # W1 starts at the 128-lane tile boundary inside slab A


# ---------------------------------------------------------------------------
# Fused Pallas kernel: scale+PE'd embeddings -> NUM_LAYERS encoder layers.
# ---------------------------------------------------------------------------
def fused_encoder_kernel(x_ref, mask_ref, wa_ref, wb_ref, vec_ref, o_ref, *,
                         num_layers, nhead, d_model, dim_ff):
    x = x_ref[...]                                    # (N, E), rows (s, b)
    valid = mask_ref[...] != 0.0                      # (N, N) same-batch mask
    dh = d_model // nhead

    for l in range(num_layers):                       # static unroll (L = 2)
        wa = wa_ref[l]                                # (E, 128+F): [Wqkv|pad|W1]
        wb = wb_ref[l]                                # (F+E, E):   [W2 ; Wo]
        vec = vec_ref[l]                              # (8, 3E) bias/LN rows
        wqkv = wa[:, 0:3 * d_model]
        w1 = wa[:, _W1_LANE_OFF:_W1_LANE_OFF + dim_ff]
        w2 = wb[0:dim_ff, :]
        wo = wb[dim_ff:dim_ff + d_model, :]
        bqkv = vec[0:1, 0:3 * d_model]
        bo = vec[1:2, 0:d_model]
        ln1w = vec[2:3, 0:d_model]
        ln1b = vec[3:4, 0:d_model]
        b1 = vec[4:5, 0:dim_ff]
        b2 = vec[5:6, 0:d_model]
        ln2w = vec[6:7, 0:d_model]
        ln2b = vec[7:8, 0:d_model]

        # --- fused QKV projection (1/sqrt(dh) folded into the Q slice) ------
        qkv = jnp.dot(x, wqkv, preferred_element_type=jnp.float32) + bqkv  # (N,3E)

        # --- per-head attention on lane slices (no sublane relayout) --------
        heads = []
        for h in range(nhead):
            qh = qkv[:, h * dh:(h + 1) * dh]
            kh = qkv[:, d_model + h * dh:d_model + (h + 1) * dh]
            vh = qkv[:, 2 * d_model + h * dh:2 * d_model + (h + 1) * dh]
            s = lax.dot_general(qh, kh, (((1,), (1,)), ((), ())),
                                preferred_element_type=jnp.float32)   # (N, N)
            s = jnp.where(valid, s, jnp.float32(-1e30))
            s = s - jnp.max(s, axis=-1, keepdims=True)
            p = jnp.exp(s)
            p = p * pl.reciprocal(jnp.sum(p, axis=-1, keepdims=True),
                                  approx=False)
            heads.append(jnp.dot(p, vh, preferred_element_type=jnp.float32))
        attn = jnp.concatenate(heads, axis=-1)                          # (N, E)
        attn = jnp.dot(attn, wo, preferred_element_type=jnp.float32) + bo

        # --- residual + LayerNorm 1 (post-norm) -----------------------------
        x1 = x + attn
        mu = jnp.mean(x1, axis=-1, keepdims=True)
        var = jnp.mean((x1 - mu) ** 2, axis=-1, keepdims=True)
        x1 = (x1 - mu) / jnp.sqrt(var + LN_EPS) * ln1w + ln1b

        # --- feed-forward (linear -> relu -> linear) ------------------------
        h1 = jnp.maximum(
            jnp.dot(x1, w1, preferred_element_type=jnp.float32) + b1, 0.0)
        h2 = jnp.dot(h1, w2, preferred_element_type=jnp.float32) + b2

        # --- residual + LayerNorm 2 ------------------------------------------
        x2 = x1 + h2
        mu2 = jnp.mean(x2, axis=-1, keepdims=True)
        var2 = jnp.mean((x2 - mu2) ** 2, axis=-1, keepdims=True)
        x = (x2 - mu2) / jnp.sqrt(var2 + LN_EPS) * ln2w + ln2b

    o_ref[...] = x.astype(o_ref.dtype)


# ---------------------------------------------------------------------------
# One-time parameter packing (constant folds outside the kernel)
# ---------------------------------------------------------------------------
def prepare_fused_params(layer_params):
    """Pack per-layer weights into 3 layer-stacked slabs: pre-transposed to
    x @ W form, QKV fused, 1/sqrt(head_dim) folded into Wq/bq."""
    qs = 1.0 / math.sqrt(D_MODEL // N_HEAD)
    mat_a, mat_b, vecs = [], [], []
    for p in layer_params:
        (wq, wk, wv, bq, bk, bv, wo, bo, ln1w, ln1b,
         w1, b1, w2, b2, ln2w, ln2b) = p
        wqkv = jnp.concatenate([wq.T * qs, wk.T, wv.T], axis=1)   # (E, 3E)
        bqkv = jnp.concatenate([bq * qs, bk, bv], axis=1)         # (1, 3E)
        pad = jnp.zeros((D_MODEL, _W1_LANE_OFF - 3 * D_MODEL), jnp.float32)
        mat_a.append(jnp.concatenate([wqkv, pad, w1.T], axis=1))  # (E, 128+F)
        mat_b.append(jnp.concatenate([w2.T, wo.T], axis=0))       # (F+E, E)

        def row(v):
            v = v.reshape(1, -1)
            return jnp.pad(v, ((0, 0), (0, 3 * D_MODEL - v.shape[1])))
        vecs.append(jnp.concatenate(
            [row(bqkv), row(bo), row(ln1w), row(ln1b),
             row(b1), row(b2), row(ln2w), row(ln2b)], axis=0))    # (8, 3E)
    return jnp.stack(mat_a), jnp.stack(mat_b), jnp.stack(vecs)


# ---------------------------------------------------------------------------
# Wrapper: embedding gather (XLA glue) + ONE fused pallas_call
# ---------------------------------------------------------------------------
def _vmem_spec():
    # Whole array resident in VMEM; no grid needed at these sizes.
    return pl.BlockSpec(memory_space=pltpu.MemorySpace.VMEM)


@jax.jit
def transformer_encoder_forward(src_tokens, emb_table_scaled, pe,
                                mat_a, mat_b, vecs):
    """src_tokens: (S, B) int32 (PyTorch convention). Returns (S, B, E)."""
    S, B = src_tokens.shape
    # Embedding lookup (tiny XLA gather); sqrt(d_model) already folded into
    # the table, so positional encoding is a plain add.  Rows ordered (s, b).
    # TODO(synk): the gather could be pulled in-kernel via scalar prefetch +
    # DMA gather; at VOCAB=50/E=32 it is negligible glue.
    x = jnp.take(emb_table_scaled, src_tokens, axis=0)            # (S, B, E)
    x = (x + pe[:S][:, None, :]).reshape(S * B, D_MODEL)

    # Static same-batch attention mask, precomputed (constant-folded by XLA).
    idx = np.arange(S * B, dtype=np.int32)
    valid = ((idx[:, None] % B) == (idx[None, :] % B)).astype(np.float32)
    valid = jnp.asarray(valid)

    kernel = functools.partial(fused_encoder_kernel, num_layers=NUM_LAYERS,
                               nhead=N_HEAD, d_model=D_MODEL, dim_ff=DIM_FF)
    # TODO(synk): if S*B is scaled up, add a ("parallel",) grid over row tiles
    # (v7x second TensorCore) and set vmem_limit_bytes against 64 MiB.
    out = pl.pallas_call(
        kernel,
        out_shape=jax.ShapeDtypeStruct((S * B, D_MODEL), jnp.float32),
        in_specs=[_vmem_spec() for _ in range(5)],
        out_specs=_vmem_spec(),
    )(x, valid, mat_a, mat_b, vecs)
    return out.reshape(S, B, D_MODEL)


# ---------------------------------------------------------------------------
# Parameters / positional encoding (deterministic)
# ---------------------------------------------------------------------------
def sinusoidal_pe(max_len, d_model):
    pos = jnp.arange(max_len, dtype=jnp.float32)[:, None]
    div = jnp.exp(jnp.arange(0, d_model, 2, dtype=jnp.float32)
                  * (-math.log(10000.0) / d_model))
    pe = jnp.zeros((max_len, d_model), jnp.float32)
    pe = pe.at[:, 0::2].set(jnp.sin(pos * div))
    pe = pe.at[:, 1::2].set(jnp.cos(pos * div))
    return pe


def init_layer_params(key):
    ks = jax.random.split(key, 8)
    def w(k, shape, fan_in):
        return (jax.random.normal(k, shape, jnp.float32) / math.sqrt(fan_in))
    wq = w(ks[0], (D_MODEL, D_MODEL), D_MODEL)
    wk = w(ks[1], (D_MODEL, D_MODEL), D_MODEL)
    wv = w(ks[2], (D_MODEL, D_MODEL), D_MODEL)
    bq = jnp.zeros((1, D_MODEL), jnp.float32)
    bk = jnp.zeros((1, D_MODEL), jnp.float32)
    bv = jnp.zeros((1, D_MODEL), jnp.float32)
    wo = w(ks[3], (D_MODEL, D_MODEL), D_MODEL)
    bo = jnp.zeros((1, D_MODEL), jnp.float32)
    ln1w = jnp.ones((1, D_MODEL), jnp.float32)
    ln1b = jnp.zeros((1, D_MODEL), jnp.float32)
    w1 = w(ks[4], (DIM_FF, D_MODEL), D_MODEL)
    b1 = 0.01 * jax.random.normal(ks[5], (1, DIM_FF), jnp.float32)
    w2 = w(ks[6], (D_MODEL, DIM_FF), DIM_FF)
    b2 = 0.01 * jax.random.normal(ks[7], (1, D_MODEL), jnp.float32)
    ln2w = jnp.ones((1, D_MODEL), jnp.float32)
    ln2b = jnp.zeros((1, D_MODEL), jnp.float32)
    return (wq, wk, wv, bq, bk, bv, wo, bo, ln1w, ln1b,
            w1, b1, w2, b2, ln2w, ln2b)


# ---------------------------------------------------------------------------
# Pure-JAX reference (mirrors the PyTorch module) for validation
# ---------------------------------------------------------------------------
def _ref_layer(x, p):
    (wq, wk, wv, bq, bk, bv, wo, bo, ln1w, ln1b,
     w1, b1, w2, b2, ln2w, ln2b) = p
    B, S, E = x.shape
    dh = E // N_HEAD
    q = x @ wq.T + bq
    k = x @ wk.T + bk
    v = x @ wv.T + bv
    q = q.reshape(B, S, N_HEAD, dh).transpose(0, 2, 1, 3) / math.sqrt(dh)
    k = k.reshape(B, S, N_HEAD, dh).transpose(0, 2, 1, 3)
    v = v.reshape(B, S, N_HEAD, dh).transpose(0, 2, 1, 3)
    s = jnp.einsum('bhqd,bhkd->bhqk', q, k)
    p_ = jax.nn.softmax(s, axis=-1)
    a = jnp.einsum('bhqk,bhkd->bhqd', p_, v).transpose(0, 2, 1, 3).reshape(B, S, E)
    a = a @ wo.T + bo
    x1 = x + a
    x1 = (x1 - x1.mean(-1, keepdims=True)) / jnp.sqrt(x1.var(-1, keepdims=True) + LN_EPS) * ln1w + ln1b
    h = jnp.maximum(x1 @ w1.T + b1, 0.0) @ w2.T + b2
    x2 = x1 + h
    return (x2 - x2.mean(-1, keepdims=True)) / jnp.sqrt(x2.var(-1, keepdims=True) + LN_EPS) * ln2w + ln2b


def _ref_forward(src_tokens, emb_table, pe, layer_params):
    emb = jnp.take(emb_table, src_tokens, axis=0) * math.sqrt(D_MODEL)  # (S,B,E)
    x = emb + pe[:src_tokens.shape[0]][:, None, :]
    x = jnp.transpose(x, (1, 0, 2))
    for p in layer_params:
        x = _ref_layer(x, p)
    return jnp.transpose(x, (1, 0, 2))


# ---------------------------------------------------------------------------
if __name__ == "__main__":
    root = jax.random.PRNGKey(0)
    k_emb, k_tok, k_l0, k_l1 = jax.random.split(root, 4)

    emb_table = jax.random.normal(k_emb, (VOCAB, D_MODEL), jnp.float32)
    pe = sinusoidal_pe(64, D_MODEL)
    layer_params = [init_layer_params(k) for k in (k_l0, k_l1)][:NUM_LAYERS]

    src = jax.random.randint(k_tok, (SEQ, BATCH), 0, VOCAB, dtype=jnp.int32)

    # one-time prep: packed slabs + scale-folded embedding table
    mat_a, mat_b, vecs = prepare_fused_params(layer_params)
    emb_scaled = emb_table * math.sqrt(D_MODEL)

    out = transformer_encoder_forward(src, emb_scaled, pe, mat_a, mat_b, vecs)
    out = jax.block_until_ready(out)

    ref = jax.block_until_ready(_ref_forward(src, emb_table, pe, layer_params))
    np.testing.assert_allclose(np.asarray(out), np.asarray(ref), rtol=1e-4, atol=1e-4)
    assert out.shape == (SEQ, BATCH, D_MODEL)

    print("KERNEL_OK")
</pallas_src>

<mosaic_0001>
module attributes {stable_mosaic.version = 11 : i64} {
  func.func @fused_encoder_kernel(%arg0: memref<16x32xf32, #tpu.memory_space<vmem>>, %arg1: memref<16x16xf32, #tpu.memory_space<vmem>>, %arg2: memref<2x32x192xf32, #tpu.memory_space<vmem>>, %arg3: memref<2x96x32xf32, #tpu.memory_space<vmem>>, %arg4: memref<2x8x96xf32, #tpu.memory_space<vmem>>, %arg5: memref<16x32xf32, #tpu.memory_space<vmem>>) attributes {dimension_semantics = [], scalar_prefetch = 0 : i64, scratch_operands = 0 : i64, tpu.core_type = #tpu.core_type<tc>} {
    %c0 = arith.constant 0 : index
    %c0_0 = arith.constant 0 : index
    %0 = vector.load %arg0[%c0, %c0_0] : memref<16x32xf32, #tpu.memory_space<vmem>>, vector<16x32xf32>
    %c0_1 = arith.constant 0 : index
    %c0_2 = arith.constant 0 : index
    %1 = vector.load %arg1[%c0_1, %c0_2] : memref<16x16xf32, #tpu.memory_space<vmem>>, vector<16x16xf32>
    %cst = arith.constant 0.000000e+00 : f32
    %2 = vector.broadcast %cst : f32 to vector<16x16xf32>
    %3 = arith.cmpf one, %1, %2 : vector<16x16xf32>
    %c0_3 = arith.constant 0 : index
    %c0_4 = arith.constant 0 : index
    %c0_5 = arith.constant 0 : index
    %4 = vector.load %arg2[%c0_3, %c0_4, %c0_5] : memref<2x32x192xf32, #tpu.memory_space<vmem>>, vector<1x32x192xf32>
    %5 = vector.shape_cast %4 : vector<1x32x192xf32> to vector<32x192xf32>
    %c0_6 = arith.constant 0 : index
    %c0_7 = arith.constant 0 : index
    %c0_8 = arith.constant 0 : index
    %6 = vector.load %arg3[%c0_6, %c0_7, %c0_8] : memref<2x96x32xf32, #tpu.memory_space<vmem>>, vector<1x96x32xf32>
    %7 = vector.shape_cast %6 : vector<1x96x32xf32> to vector<96x32xf32>
    %c0_9 = arith.constant 0 : index
    %c0_10 = arith.constant 0 : index
    %c0_11 = arith.constant 0 : index
    %8 = vector.load %arg4[%c0_9, %c0_10, %c0_11] : memref<2x8x96xf32, #tpu.memory_space<vmem>>, vector<1x8x96xf32>
    %9 = vector.shape_cast %8 : vector<1x8x96xf32> to vector<8x96xf32>
    %10 = vector.extract_strided_slice %5 {offsets = [0, 0], sizes = [32, 96], strides = [1, 1]} : vector<32x192xf32> to vector<32x96xf32>
    %11 = vector.extract_strided_slice %5 {offsets = [0, 128], sizes = [32, 64], strides = [1, 1]} : vector<32x192xf32> to vector<32x64xf32>
    %12 = vector.extract_strided_slice %7 {offsets = [0, 0], sizes = [64, 32], strides = [1, 1]} : vector<96x32xf32> to vector<64x32xf32>
    %13 = vector.extract_strided_slice %7 {offsets = [64, 0], sizes = [32, 32], strides = [1, 1]} : vector<96x32xf32> to vector<32x32xf32>
    %14 = vector.extract_strided_slice %9 {offsets = [0, 0], sizes = [1, 96], strides = [1, 1]} : vector<8x96xf32> to vector<1x96xf32>
    %15 = vector.extract_strided_slice %9 {offsets = [1, 0], sizes = [1, 32], strides = [1, 1]} : vector<8x96xf32> to vector<1x32xf32>
    %16 = vector.extract_strided_slice %9 {offsets = [2, 0], sizes = [1, 32], strides = [1, 1]} : vector<8x96xf32> to vector<1x32xf32>
    %17 = vector.extract_strided_slice %9 {offsets = [3, 0], sizes = [1, 32], strides = [1, 1]} : vector<8x96xf32> to vector<1x32xf32>
    %18 = vector.extract_strided_slice %9 {offsets = [4, 0], sizes = [1, 64], strides = [1, 1]} : vector<8x96xf32> to vector<1x64xf32>
    %19 = vector.extract_strided_slice %9 {offsets = [5, 0], sizes = [1, 32], strides = [1, 1]} : vector<8x96xf32> to vector<1x32xf32>
    %20 = vector.extract_strided_slice %9 {offsets = [6, 0], sizes = [1, 32], strides = [1, 1]} : vector<8x96xf32> to vector<1x32xf32>
    %21 = vector.extract_strided_slice %9 {offsets = [7, 0], sizes = [1, 32], strides = [1, 1]} : vector<8x96xf32> to vector<1x32xf32>
    %cst_12 = arith.constant dense<0.000000e+00> : vector<16x96xf32>
    %22 = tpu.matmul %0, %10, %cst_12 {dimension_numbers = #tpu.dot_dimension_numbers<[1], [0], [0], [1], [0, 0, 1, 1], [], []>} : vector<16x32xf32>, vector<32x96xf32>, vector<16x96xf32> -> vector<16x96xf32>
    %23 = vector.broadcast %14 : vector<1x96xf32> to vector<16x96xf32>
    %24 = arith.addf %22, %23 : vector<16x96xf32>
    %25 = vector.extract_strided_slice %24 {offsets = [0, 0], sizes = [16, 8], strides = [1, 1]} : vector<16x96xf32> to vector<16x8xf32>
    %26 = vector.extract_strided_slice %24 {offsets = [0, 32], sizes = [16, 8], strides = [1, 1]} : vector<16x96xf32> to vector<16x8xf32>
    %27 = vector.extract_strided_slice %24 {offsets = [0, 64], sizes = [16, 8], strides = [1, 1]} : vector<16x96xf32> to vector<16x8xf32>
    %cst_13 = arith.constant dense<0.000000e+00> : vector<16x16xf32>
    %28 = tpu.matmul %25, %26, %cst_13 {dimension_numbers = #tpu.dot_dimension_numbers<[1], [1], [0], [0], [0, 0, 1, 0], [], []>} : vector<16x8xf32>, vector<16x8xf32>, vector<16x16xf32> -> vector<16x16xf32>
    %cst_14 = arith.constant -1.000000e+30 : f32
    %29 = vector.broadcast %cst_14 : f32 to vector<16x16xf32>
    %30 = arith.select %3, %28, %29 : vector<16x16xi1>, vector<16x16xf32>
    %cst_15 = arith.constant dense<0xFF800000> : vector<16xf32>
    %31 = vector.multi_reduction <maximumf>, %30, %cst_15 [1] : vector<16x16xf32> to vector<16xf32>
    %32 = vector.shape_cast %31 : vector<16xf32> to vector<16x1xf32>
    %33 = vector.broadcast %32 : vector<16x1xf32> to vector<16x16xf32>
    %34 = arith.subf %30, %33 : vector<16x16xf32>
    %35 = math.exp %34 : vector<16x16xf32>
    %cst_16 = arith.constant dense<0.000000e+00> : vector<16xf32>
    %36 = vector.multi_reduction <add>, %35, %cst_16 [1] : vector<16x16xf32> to vector<16xf32>
    %37 = vector.shape_cast %36 : vector<16xf32> to vector<16x1xf32>
    %38 = tpu.reciprocal %37 : vector<16x1xf32> -> vector<16x1xf32>
    %39 = vector.broadcast %38 : vector<16x1xf32> to vector<16x16xf32>
    %40 = arith.mulf %35, %39 : vector<16x16xf32>
    %cst_17 = arith.constant dense<0.000000e+00> : vector<16x8xf32>
    %41 = tpu.matmul %40, %27, %cst_17 {dimension_numbers = #tpu.dot_dimension_numbers<[1], [0], [0], [1], [0, 0, 1, 1], [], []>} : vector<16x16xf32>, vector<16x8xf32>, vector<16x8xf32> -> vector<16x8xf32>
    %42 = vector.extract_strided_slice %24 {offsets = [0, 8], sizes = [16, 8], strides = [1, 1]} : vector<16x96xf32> to vector<16x8xf32>
    %43 = vector.extract_strided_slice %24 {offsets = [0, 40], sizes = [16, 8], strides = [1, 1]} : vector<16x96xf32> to vector<16x8xf32>
    %44 = vector.extract_strided_slice %24 {offsets = [0, 72], sizes = [16, 8], strides = [1, 1]} : vector<16x96xf32> to vector<16x8xf32>
    %cst_18 = arith.constant dense<0.000000e+00> : vector<16x16xf32>
    %45 = tpu.matmul %42, %43, %cst_18 {dimension_numbers = #tpu.dot_dimension_numbers<[1], [1], [0], [0], [0, 0, 1, 0], [], []>} : vector<16x8xf32>, vector<16x8xf32>, vector<16x16xf32> -> vector<16x16xf32>
    %cst_19 = arith.constant -1.000000e+30 : f32
    %46 = vector.broadcast %cst_19 : f32 to vector<16x16xf32>
    %47 = arith.select %3, %45, %46 : vector<16x16xi1>, vector<16x16xf32>
    %cst_20 = arith.constant dense<0xFF800000> : vector<16xf32>
    %48 = vector.multi_reduction <maximumf>, %47, %cst_20 [1] : vector<16x16xf32> to vector<16xf32>
    %49 = vector.shape_cast %48 : vector<16xf32> to vector<16x1xf32>
    %50 = vector.broadcast %49 : vector<16x1xf32> to vector<16x16xf32>
    %51 = arith.subf %47, %50 : vector<16x16xf32>
    %52 = math.exp %51 : vector<16x16xf32>
    %cst_21 = arith.constant dense<0.000000e+00> : vector<16xf32>
    %53 = vector.multi_reduction <add>, %52, %cst_21 [1] : vector<16x16xf32> to vector<16xf32>
    %54 = vector.shape_cast %53 : vector<16xf32> to vector<16x1xf32>
    %55 = tpu.reciprocal %54 : vector<16x1xf32> -> vector<16x1xf32>
    %56 = vector.broadcast %55 : vector<16x1xf32> to vector<16x16xf32>
    %57 = arith.mulf %52, %56 : vector<16x16xf32>
    %cst_22 = arith.constant dense<0.000000e+00> : vector<16x8xf32>
    %58 = tpu.matmul %57, %44, %cst_22 {dimension_numbers = #tpu.dot_dimension_numbers<[1], [0], [0], [1], [0, 0, 1, 1], [], []>} : vector<16x16xf32>, vector<16x8xf32>, vector<16x8xf32> -> vector<16x8xf32>
    %59 = vector.extract_strided_slice %24 {offsets = [0, 16], sizes = [16, 8], strides = [1, 1]} : vector<16x96xf32> to vector<16x8xf32>
    %60 = vector.extract_strided_slice %24 {offsets = [0, 48], sizes = [16, 8], strides = [1, 1]} : vector<16x96xf32> to vector<16x8xf32>
    %61 = vector.extract_strided_slice %24 {offsets = [0, 80], sizes = [16, 8], strides = [1, 1]} : vector<16x96xf32> to vector<16x8xf32>
    %cst_23 = arith.constant dense<0.000000e+00> : vector<16x16xf32>
    %62 = tpu.matmul %59, %60, %cst_23 {dimension_numbers = #tpu.dot_dimension_numbers<[1], [1], [0], [0], [0, 0, 1, 0], [], []>} : vector<16x8xf32>, vector<16x8xf32>, vector<16x16xf32> -> vector<16x16xf32>
    %cst_24 = arith.constant -1.000000e+30 : f32
    %63 = vector.broadcast %cst_24 : f32 to vector<16x16xf32>
    %64 = arith.select %3, %62, %63 : vector<16x16xi1>, vector<16x16xf32>
    %cst_25 = arith.constant dense<0xFF800000> : vector<16xf32>
    %65 = vector.multi_reduction <maximumf>, %64, %cst_25 [1] : vector<16x16xf32> to vector<16xf32>
    %66 = vector.shape_cast %65 : vector<16xf32> to vector<16x1xf32>
    %67 = vector.broadcast %66 : vector<16x1xf32> to vector<16x16xf32>
    %68 = arith.subf %64, %67 : vector<16x16xf32>
    %69 = math.exp %68 : vector<16x16xf32>
    %cst_26 = arith.constant dense<0.000000e+00> : vector<16xf32>
    %70 = vector.multi_reduction <add>, %69, %cst_26 [1] : vector<16x16xf32> to vector<16xf32>
    %71 = vector.shape_cast %70 : vector<16xf32> to vector<16x1xf32>
    %72 = tpu.reciprocal %71 : vector<16x1xf32> -> vector<16x1xf32>
    %73 = vector.broadcast %72 : vector<16x1xf32> to vector<16x16xf32>
    %74 = arith.mulf %69, %73 : vector<16x16xf32>
    %cst_27 = arith.constant dense<0.000000e+00> : vector<16x8xf32>
    %75 = tpu.matmul %74, %61, %cst_27 {dimension_numbers = #tpu.dot_dimension_numbers<[1], [0], [0], [1], [0, 0, 1, 1], [], []>} : vector<16x16xf32>, vector<16x8xf32>, vector<16x8xf32> -> vector<16x8xf32>
    %76 = vector.extract_strided_slice %24 {offsets = [0, 24], sizes = [16, 8], strides = [1, 1]} : vector<16x96xf32> to vector<16x8xf32>
    %77 = vector.extract_strided_slice %24 {offsets = [0, 56], sizes = [16, 8], strides = [1, 1]} : vector<16x96xf32> to vector<16x8xf32>
    %78 = vector.extract_strided_slice %24 {offsets = [0, 88], sizes = [16, 8], strides = [1, 1]} : vector<16x96xf32> to vector<16x8xf32>
    %cst_28 = arith.constant dense<0.000000e+00> : vector<16x16xf32>
    %79 = tpu.matmul %76, %77, %cst_28 {dimension_numbers = #tpu.dot_dimension_numbers<[1], [1], [0], [0], [0, 0, 1, 0], [], []>} : vector<16x8xf32>, vector<16x8xf32>, vector<16x16xf32> -> vector<16x16xf32>
    %cst_29 = arith.constant -1.000000e+30 : f32
    %80 = vector.broadcast %cst_29 : f32 to vector<16x16xf32>
    %81 = arith.select %3, %79, %80 : vector<16x16xi1>, vector<16x16xf32>
    %cst_30 = arith.constant dense<0xFF800000> : vector<16xf32>
    %82 = vector.multi_reduction <maximumf>, %81, %cst_30 [1] : vector<16x16xf32> to vector<16xf32>
    %83 = vector.shape_cast %82 : vector<16xf32> to vector<16x1xf32>
    %84 = vector.broadcast %83 : vector<16x1xf32> to vector<16x16xf32>
    %85 = arith.subf %81, %84 : vector<16x16xf32>
    %86 = math.exp %85 : vector<16x16xf32>
    %cst_31 = arith.constant dense<0.000000e+00> : vector<16xf32>
    %87 = vector.multi_reduction <add>, %86, %cst_31 [1] : vector<16x16xf32> to vector<16xf32>
    %88 = vector.shape_cast %87 : vector<16xf32> to vector<16x1xf32>
    %89 = tpu.reciprocal %88 : vector<16x1xf32> -> vector<16x1xf32>
    %90 = vector.broadcast %89 : vector<16x1xf32> to vector<16x16xf32>
    %91 = arith.mulf %86, %90 : vector<16x16xf32>
    %cst_32 = arith.constant dense<0.000000e+00> : vector<16x8xf32>
    %92 = tpu.matmul %91, %78, %cst_32 {dimension_numbers = #tpu.dot_dimension_numbers<[1], [0], [0], [1], [0, 0, 1, 1], [], []>} : vector<16x16xf32>, vector<16x8xf32>, vector<16x8xf32> -> vector<16x8xf32>
    %93 = tpu.concatenate %41, %58, %75, %92 in 1 : vector<16x8xf32>, vector<16x8xf32>, vector<16x8xf32>, vector<16x8xf32> -> vector<16x32xf32>
    %cst_33 = arith.constant dense<0.000000e+00> : vector<16x32xf32>
    %94 = tpu.matmul %93, %13, %cst_33 {dimension_numbers = #tpu.dot_dimension_numbers<[1], [0], [0], [1], [0, 0, 1, 1], [], []>} : vector<16x32xf32>, vector<32x32xf32>, vector<16x32xf32> -> vector<16x32xf32>
    %95 = vector.broadcast %15 : vector<1x32xf32> to vector<16x32xf32>
    %96 = arith.addf %94, %95 : vector<16x32xf32>
    %97 = arith.addf %0, %96 : vector<16x32xf32>
    %cst_34 = arith.constant dense<0.000000e+00> : vector<16xf32>
    %98 = vector.multi_reduction <add>, %97, %cst_34 [1] : vector<16x32xf32> to vector<16xf32>
    %99 = vector.shape_cast %98 : vector<16xf32> to vector<16x1xf32>
    %cst_35 = arith.constant 3.200000e+01 : f32
    %100 = vector.broadcast %cst_35 : f32 to vector<16x1xf32>
    %101 = arith.divf %99, %100 : vector<16x1xf32>
    %102 = vector.broadcast %101 : vector<16x1xf32> to vector<16x32xf32>
    %103 = arith.subf %97, %102 : vector<16x32xf32>
    %104 = arith.mulf %103, %103 : vector<16x32xf32>
    %cst_36 = arith.constant dense<0.000000e+00> : vector<16xf32>
    %105 = vector.multi_reduction <add>, %104, %cst_36 [1] : vector<16x32xf32> to vector<16xf32>
    %106 = vector.shape_cast %105 : vector<16xf32> to vector<16x1xf32>
    %cst_37 = arith.constant 3.200000e+01 : f32
    %107 = vector.broadcast %cst_37 : f32 to vector<16x1xf32>
    %108 = arith.divf %106, %107 : vector<16x1xf32>
    %109 = vector.broadcast %101 : vector<16x1xf32> to vector<16x32xf32>
    %110 = arith.subf %97, %109 : vector<16x32xf32>
    %cst_38 = arith.constant 9.99999974E-6 : f32
    %111 = vector.broadcast %cst_38 : f32 to vector<16x1xf32>
    %112 = arith.addf %108, %111 : vector<16x1xf32>
    %113 = math.sqrt %112 : vector<16x1xf32>
    %114 = vector.broadcast %113 : vector<16x1xf32> to vector<16x32xf32>
    %115 = arith.divf %110, %114 : vector<16x32xf32>
    %116 = vector.broadcast %16 : vector<1x32xf32> to vector<16x32xf32>
    %117 = arith.mulf %115, %116 : vector<16x32xf32>
    %118 = vector.broadcast %17 : vector<1x32xf32> to vector<16x32xf32>
    %119 = arith.addf %117, %118 : vector<16x32xf32>
    %cst_39 = arith.constant dense<0.000000e+00> : vector<16x64xf32>
    %120 = tpu.matmul %119, %11, %cst_39 {dimension_numbers = #tpu.dot_dimension_numbers<[1], [0], [0], [1], [0, 0, 1, 1], [], []>} : vector<16x32xf32>, vector<32x64xf32>, vector<16x64xf32> -> vector<16x64xf32>
    %121 = vector.broadcast %18 : vector<1x64xf32> to vector<16x64xf32>
    %122 = arith.addf %120, %121 : vector<16x64xf32>
    %cst_40 = arith.constant 0.000000e+00 : f32
    %123 = vector.broadcast %cst_40 : f32 to vector<16x64xf32>
    %124 = arith.maximumf %122, %123 : vector<16x64xf32>
    %cst_41 = arith.constant dense<0.000000e+00> : vector<16x32xf32>
    %125 = tpu.matmul %124, %12, %cst_41 {dimension_numbers = #tpu.dot_dimension_numbers<[1], [0], [0], [1], [0, 0, 1, 1], [], []>} : vector<16x64xf32>, vector<64x32xf32>, vector<16x32xf32> -> vector<16x32xf32>
    %126 = vector.broadcast %19 : vector<1x32xf32> to vector<16x32xf32>
    %127 = arith.addf %125, %126 : vector<16x32xf32>
    %128 = arith.addf %119, %127 : vector<16x32xf32>
    %cst_42 = arith.constant dense<0.000000e+00> : vector<16xf32>
    %129 = vector.multi_reduction <add>, %128, %cst_42 [1] : vector<16x32xf32> to vector<16xf32>
    %130 = vector.shape_cast %129 : vector<16xf32> to vector<16x1xf32>
    %cst_43 = arith.constant 3.200000e+01 : f32
    %131 = vector.broadcast %cst_43 : f32 to vector<16x1xf32>
    %132 = arith.divf %130, %131 : vector<16x1xf32>
    %133 = vector.broadcast %132 : vector<16x1xf32> to vector<16x32xf32>
    %134 = arith.subf %128, %133 : vector<16x32xf32>
    %135 = arith.mulf %134, %134 : vector<16x32xf32>
    %cst_44 = arith.constant dense<0.000000e+00> : vector<16xf32>
    %136 = vector.multi_reduction <add>, %135, %cst_44 [1] : vector<16x32xf32> to vector<16xf32>
    %137 = vector.shape_cast %136 : vector<16xf32> to vector<16x1xf32>
    %cst_45 = arith.constant 3.200000e+01 : f32
    %138 = vector.broadcast %cst_45 : f32 to vector<16x1xf32>
    %139 = arith.divf %137, %138 : vector<16x1xf32>
    %140 = vector.broadcast %132 : vector<16x1xf32> to vector<16x32xf32>
    %141 = arith.subf %128, %140 : vector<16x32xf32>
    %cst_46 = arith.constant 9.99999974E-6 : f32
    %142 = vector.broadcast %cst_46 : f32 to vector<16x1xf32>
    %143 = arith.addf %139, %142 : vector<16x1xf32>
    %144 = math.sqrt %143 : vector<16x1xf32>
    %145 = vector.broadcast %144 : vector<16x1xf32> to vector<16x32xf32>
    %146 = arith.divf %141, %145 : vector<16x32xf32>
    %147 = vector.broadcast %20 : vector<1x32xf32> to vector<16x32xf32>
    %148 = arith.mulf %146, %147 : vector<16x32xf32>
    %149 = vector.broadcast %21 : vector<1x32xf32> to vector<16x32xf32>
    %150 = arith.addf %148, %149 : vector<16x32xf32>
    %c1 = arith.constant 1 : index
    %c0_47 = arith.constant 0 : index
    %c0_48 = arith.constant 0 : index
    %151 = vector.load %arg2[%c1, %c0_47, %c0_48] : memref<2x32x192xf32, #tpu.memory_space<vmem>>, vector<1x32x192xf32>
    %152 = vector.shape_cast %151 : vector<1x32x192xf32> to vector<32x192xf32>
    %c1_49 = arith.constant 1 : index
    %c0_50 = arith.constant 0 : index
    %c0_51 = arith.constant 0 : index
    %153 = vector.load %arg3[%c1_49, %c0_50, %c0_51] : memref<2x96x32xf32, #tpu.memory_space<vmem>>, vector<1x96x32xf32>
    %154 = vector.shape_cast %153 : vector<1x96x32xf32> to vector<96x32xf32>
    %c1_52 = arith.constant 1 : index
    %c0_53 = arith.constant 0 : index
    %c0_54 = arith.constant 0 : index
    %155 = vector.load %arg4[%c1_52, %c0_53, %c0_54] : memref<2x8x96xf32, #tpu.memory_space<vmem>>, vector<1x8x96xf32>
    %156 = vector.shape_cast %155 : vector<1x8x96xf32> to vector<8x96xf32>
    %157 = vector.extract_strided_slice %152 {offsets = [0, 0], sizes = [32, 96], strides = [1, 1]} : vector<32x192xf32> to vector<32x96xf32>
    %158 = vector.extract_strided_slice %152 {offsets = [0, 128], sizes = [32, 64], strides = [1, 1]} : vector<32x192xf32> to vector<32x64xf32>
    %159 = vector.extract_strided_slice %154 {offsets = [0, 0], sizes = [64, 32], strides = [1, 1]} : vector<96x32xf32> to vector<64x32xf32>
    %160 = vector.extract_strided_slice %154 {offsets = [64, 0], sizes = [32, 32], strides = [1, 1]} : vector<96x32xf32> to vector<32x32xf32>
    %161 = vector.extract_strided_slice %156 {offsets = [0, 0], sizes = [1, 96], strides = [1, 1]} : vector<8x96xf32> to vector<1x96xf32>
    %162 = vector.extract_strided_slice %156 {offsets = [1, 0], sizes = [1, 32], strides = [1, 1]} : vector<8x96xf32> to vector<1x32xf32>
    %163 = vector.extract_strided_slice %156 {offsets = [2, 0], sizes = [1, 32], strides = [1, 1]} : vector<8x96xf32> to vector<1x32xf32>
    %164 = vector.extract_strided_slice %156 {offsets = [3, 0], sizes = [1, 32], strides = [1, 1]} : vector<8x96xf32> to vector<1x32xf32>
    %165 = vector.extract_strided_slice %156 {offsets = [4, 0], sizes = [1, 64], strides = [1, 1]} : vector<8x96xf32> to vector<1x64xf32>
    %166 = vector.extract_strided_slice %156 {offsets = [5, 0], sizes = [1, 32], strides = [1, 1]} : vector<8x96xf32> to vector<1x32xf32>
    %167 = vector.extract_strided_slice %156 {offsets = [6, 0], sizes = [1, 32], strides = [1, 1]} : vector<8x96xf32> to vector<1x32xf32>
    %168 = vector.extract_strided_slice %156 {offsets = [7, 0], sizes = [1, 32], strides = [1, 1]} : vector<8x96xf32> to vector<1x32xf32>
    %cst_55 = arith.constant dense<0.000000e+00> : vector<16x96xf32>
    %169 = tpu.matmul %150, %157, %cst_55 {dimension_numbers = #tpu.dot_dimension_numbers<[1], [0], [0], [1], [0, 0, 1, 1], [], []>} : vector<16x32xf32>, vector<32x96xf32>, vector<16x96xf32> -> vector<16x96xf32>
    %170 = vector.broadcast %161 : vector<1x96xf32> to vector<16x96xf32>
    %171 = arith.addf %169, %170 : vector<16x96xf32>
    %172 = vector.extract_strided_slice %171 {offsets = [0, 0], sizes = [16, 8], strides = [1, 1]} : vector<16x96xf32> to vector<16x8xf32>
    %173 = vector.extract_strided_slice %171 {offsets = [0, 32], sizes = [16, 8], strides = [1, 1]} : vector<16x96xf32> to vector<16x8xf32>
    %174 = vector.extract_strided_slice %171 {offsets = [0, 64], sizes = [16, 8], strides = [1, 1]} : vector<16x96xf32> to vector<16x8xf32>
    %cst_56 = arith.constant dense<0.000000e+00> : vector<16x16xf32>
    %175 = tpu.matmul %172, %173, %cst_56 {dimension_numbers = #tpu.dot_dimension_numbers<[1], [1], [0], [0], [0, 0, 1, 0], [], []>} : vector<16x8xf32>, vector<16x8xf32>, vector<16x16xf32> -> vector<16x16xf32>
    %cst_57 = arith.constant -1.000000e+30 : f32
    %176 = vector.broadcast %cst_57 : f32 to vector<16x16xf32>
    %177 = arith.select %3, %175, %176 : vector<16x16xi1>, vector<16x16xf32>
    %cst_58 = arith.constant dense<0xFF800000> : vector<16xf32>
    %178 = vector.multi_reduction <maximumf>, %177, %cst_58 [1] : vector<16x16xf32> to vector<16xf32>
    %179 = vector.shape_cast %178 : vector<16xf32> to vector<16x1xf32>
    %180 = vector.broadcast %179 : vector<16x1xf32> to vector<16x16xf32>
    %181 = arith.subf %177, %180 : vector<16x16xf32>
    %182 = math.exp %181 : vector<16x16xf32>
    %cst_59 = arith.constant dense<0.000000e+00> : vector<16xf32>
    %183 = vector.multi_reduction <add>, %182, %cst_59 [1] : vector<16x16xf32> to vector<16xf32>
    %184 = vector.shape_cast %183 : vector<16xf32> to vector<16x1xf32>
    %185 = tpu.reciprocal %184 : vector<16x1xf32> -> vector<16x1xf32>
    %186 = vector.broadcast %185 : vector<16x1xf32> to vector<16x16xf32>
    %187 = arith.mulf %182, %186 : vector<16x16xf32>
    %cst_60 = arith.constant dense<0.000000e+00> : vector<16x8xf32>
    %188 = tpu.matmul %187, %174, %cst_60 {dimension_numbers = #tpu.dot_dimension_numbers<[1], [0], [0], [1], [0, 0, 1, 1], [], []>} : vector<16x16xf32>, vector<16x8xf32>, vector<16x8xf32> -> vector<16x8xf32>
    %189 = vector.extract_strided_slice %171 {offsets = [0, 8], sizes = [16, 8], strides = [1, 1]} : vector<16x96xf32> to vector<16x8xf32>
    %190 = vector.extract_strided_slice %171 {offsets = [0, 40], sizes = [16, 8], strides = [1, 1]} : vector<16x96xf32> to vector<16x8xf32>
    %191 = vector.extract_strided_slice %171 {offsets = [0, 72], sizes = [16, 8], strides = [1, 1]} : vector<16x96xf32> to vector<16x8xf32>
    %cst_61 = arith.constant dense<0.000000e+00> : vector<16x16xf32>
    %192 = tpu.matmul %189, %190, %cst_61 {dimension_numbers = #tpu.dot_dimension_numbers<[1], [1], [0], [0], [0, 0, 1, 0], [], []>} : vector<16x8xf32>, vector<16x8xf32>, vector<16x16xf32> -> vector<16x16xf32>
    %cst_62 = arith.constant -1.000000e+30 : f32
    %193 = vector.broadcast %cst_62 : f32 to vector<16x16xf32>
    %194 = arith.select %3, %192, %193 : vector<16x16xi1>, vector<16x16xf32>
    %cst_63 = arith.constant dense<0xFF800000> : vector<16xf32>
    %195 = vector.multi_reduction <maximumf>, %194, %cst_63 [1] : vector<16x16xf32> to vector<16xf32>
    %196 = vector.shape_cast %195 : vector<16xf32> to vector<16x1xf32>
    %197 = vector.broadcast %196 : vector<16x1xf32> to vector<16x16xf32>
    %198 = arith.subf %194, %197 : vector<16x16xf32>
    %199 = math.exp %198 : vector<16x16xf32>
    %cst_64 = arith.constant dense<0.000000e+00> : vector<16xf32>
    %200 = vector.multi_reduction <add>, %199, %cst_64 [1] : vector<16x16xf32> to vector<16xf32>
    %201 = vector.shape_cast %200 : vector<16xf32> to vector<16x1xf32>
    %202 = tpu.reciprocal %201 : vector<16x1xf32> -> vector<16x1xf32>
    %203 = vector.broadcast %202 : vector<16x1xf32> to vector<16x16xf32>
    %204 = arith.mulf %199, %203 : vector<16x16xf32>
    %cst_65 = arith.constant dense<0.000000e+00> : vector<16x8xf32>
    %205 = tpu.matmul %204, %191, %cst_65 {dimension_numbers = #tpu.dot_dimension_numbers<[1], [0], [0], [1], [0, 0, 1, 1], [], []>} : vector<16x16xf32>, vector<16x8xf32>, vector<16x8xf32> -> vector<16x8xf32>
    %206 = vector.extract_strided_slice %171 {offsets = [0, 16], sizes = [16, 8], strides = [1, 1]} : vector<16x96xf32> to vector<16x8xf32>
    %207 = vector.extract_strided_slice %171 {offsets = [0, 48], sizes = [16, 8], strides = [1, 1]} : vector<16x96xf32> to vector<16x8xf32>
    %208 = vector.extract_strided_slice %171 {offsets = [0, 80], sizes = [16, 8], strides = [1, 1]} : vector<16x96xf32> to vector<16x8xf32>
    %cst_66 = arith.constant dense<0.000000e+00> : vector<16x16xf32>
    %209 = tpu.matmul %206, %207, %cst_66 {dimension_numbers = #tpu.dot_dimension_numbers<[1], [1], [0], [0], [0, 0, 1, 0], [], []>} : vector<16x8xf32>, vector<16x8xf32>, vector<16x16xf32> -> vector<16x16xf32>
    %cst_67 = arith.constant -1.000000e+30 : f32
    %210 = vector.broadcast %cst_67 : f32 to vector<16x16xf32>
    %211 = arith.select %3, %209, %210 : vector<16x16xi1>, vector<16x16xf32>
    %cst_68 = arith.constant dense<0xFF800000> : vector<16xf32>
    %212 = vector.multi_reduction <maximumf>, %211, %cst_68 [1] : vector<16x16xf32> to vector<16xf32>
    %213 = vector.shape_cast %212 : vector<16xf32> to vector<16x1xf32>
    %214 = vector.broadcast %213 : vector<16x1xf32> to vector<16x16xf32>
    %215 = arith.subf %211, %214 : vector<16x16xf32>
    %216 = math.exp %215 : vector<16x16xf32>
    %cst_69 = arith.constant dense<0.000000e+00> : vector<16xf32>
    %217 = vector.multi_reduction <add>, %216, %cst_69 [1] : vector<16x16xf32> to vector<16xf32>
    %218 = vector.shape_cast %217 : vector<16xf32> to vector<16x1xf32>
    %219 = tpu.reciprocal %218 : vector<16x1xf32> -> vector<16x1xf32>
    %220 = vector.broadcast %219 : vector<16x1xf32> to vector<16x16xf32>
    %221 = arith.mulf %216, %220 : vector<16x16xf32>
    %cst_70 = arith.constant dense<0.000000e+00> : vector<16x8xf32>
    %222 = tpu.matmul %221, %208, %cst_70 {dimension_numbers = #tpu.dot_dimension_numbers<[1], [0], [0], [1], [0, 0, 1, 1], [], []>} : vector<16x16xf32>, vector<16x8xf32>, vector<16x8xf32> -> vector<16x8xf32>
    %223 = vector.extract_strided_slice %171 {offsets = [0, 24], sizes = [16, 8], strides = [1, 1]} : vector<16x96xf32> to vector<16x8xf32>
    %224 = vector.extract_strided_slice %171 {offsets = [0, 56], sizes = [16, 8], strides = [1, 1]} : vector<16x96xf32> to vector<16x8xf32>
    %225 = vector.extract_strided_slice %171 {offsets = [0, 88], sizes = [16, 8], strides = [1, 1]} : vector<16x96xf32> to vector<16x8xf32>
    %cst_71 = arith.constant dense<0.000000e+00> : vector<16x16xf32>
    %226 = tpu.matmul %223, %224, %cst_71 {dimension_numbers = #tpu.dot_dimension_numbers<[1], [1], [0], [0], [0, 0, 1, 0], [], []>} : vector<16x8xf32>, vector<16x8xf32>, vector<16x16xf32> -> vector<16x16xf32>
    %cst_72 = arith.constant -1.000000e+30 : f32
    %227 = vector.broadcast %cst_72 : f32 to vector<16x16xf32>
    %228 = arith.select %3, %226, %227 : vector<16x16xi1>, vector<16x16xf32>
    %cst_73 = arith.constant dense<0xFF800000> : vector<16xf32>
    %229 = vector.multi_reduction <maximumf>, %228, %cst_73 [1] : vector<16x16xf32> to vector<16xf32>
    %230 = vector.shape_cast %229 : vector<16xf32> to vector<16x1xf32>
    %231 = vector.broadcast %230 : vector<16x1xf32> to vector<16x16xf32>
    %232 = arith.subf %228, %231 : vector<16x16xf32>
    %233 = math.exp %232 : vector<16x16xf32>
    %cst_74 = arith.constant dense<0.000000e+00> : vector<16xf32>
    %234 = vector.multi_reduction <add>, %233, %cst_74 [1] : vector<16x16xf32> to vector<16xf32>
    %235 = vector.shape_cast %234 : vector<16xf32> to vector<16x1xf32>
    %236 = tpu.reciprocal %235 : vector<16x1xf32> -> vector<16x1xf32>
    %237 = vector.broadcast %236 : vector<16x1xf32> to vector<16x16xf32>
    %238 = arith.mulf %233, %237 : vector<16x16xf32>
    %cst_75 = arith.constant dense<0.000000e+00> : vector<16x8xf32>
    %239 = tpu.matmul %238, %225, %cst_75 {dimension_numbers = #tpu.dot_dimension_numbers<[1], [0], [0], [1], [0, 0, 1, 1], [], []>} : vector<16x16xf32>, vector<16x8xf32>, vector<16x8xf32> -> vector<16x8xf32>
    %240 = tpu.concatenate %188, %205, %222, %239 in 1 : vector<16x8xf32>, vector<16x8xf32>, vector<16x8xf32>, vector<16x8xf32> -> vector<16x32xf32>
    %cst_76 = arith.constant dense<0.000000e+00> : vector<16x32xf32>
    %241 = tpu.matmul %240, %160, %cst_76 {dimension_numbers = #tpu.dot_dimension_numbers<[1], [0], [0], [1], [0, 0, 1, 1], [], []>} : vector<16x32xf32>, vector<32x32xf32>, vector<16x32xf32> -> vector<16x32xf32>
    %242 = vector.broadcast %162 : vector<1x32xf32> to vector<16x32xf32>
    %243 = arith.addf %241, %242 : vector<16x32xf32>
    %244 = arith.addf %150, %243 : vector<16x32xf32>
    %cst_77 = arith.constant dense<0.000000e+00> : vector<16xf32>
    %245 = vector.multi_reduction <add>, %244, %cst_77 [1] : vector<16x32xf32> to vector<16xf32>
    %246 = vector.shape_cast %245 : vector<16xf32> to vector<16x1xf32>
    %cst_78 = arith.constant 3.200000e+01 : f32
    %247 = vector.broadcast %cst_78 : f32 to vector<16x1xf32>
    %248 = arith.divf %246, %247 : vector<16x1xf32>
    %249 = vector.broadcast %248 : vector<16x1xf32> to vector<16x32xf32>
    %250 = arith.subf %244, %249 : vector<16x32xf32>
    %251 = arith.mulf %250, %250 : vector<16x32xf32>
    %cst_79 = arith.constant dense<0.000000e+00> : vector<16xf32>
    %252 = vector.multi_reduction <add>, %251, %cst_79 [1] : vector<16x32xf32> to vector<16xf32>
    %253 = vector.shape_cast %252 : vector<16xf32> to vector<16x1xf32>
    %cst_80 = arith.constant 3.200000e+01 : f32
    %254 = vector.broadcast %cst_80 : f32 to vector<16x1xf32>
    %255 = arith.divf %253, %254 : vector<16x1xf32>
    %256 = vector.broadcast %248 : vector<16x1xf32> to vector<16x32xf32>
    %257 = arith.subf %244, %256 : vector<16x32xf32>
    %cst_81 = arith.constant 9.99999974E-6 : f32
    %258 = vector.broadcast %cst_81 : f32 to vector<16x1xf32>
    %259 = arith.addf %255, %258 : vector<16x1xf32>
    %260 = math.sqrt %259 : vector<16x1xf32>
    %261 = vector.broadcast %260 : vector<16x1xf32> to vector<16x32xf32>
    %262 = arith.divf %257, %261 : vector<16x32xf32>
    %263 = vector.broadcast %163 : vector<1x32xf32> to vector<16x32xf32>
    %264 = arith.mulf %262, %263 : vector<16x32xf32>
    %265 = vector.broadcast %164 : vector<1x32xf32> to vector<16x32xf32>
    %266 = arith.addf %264, %265 : vector<16x32xf32>
    %cst_82 = arith.constant dense<0.000000e+00> : vector<16x64xf32>
    %267 = tpu.matmul %266, %158, %cst_82 {dimension_numbers = #tpu.dot_dimension_numbers<[1], [0], [0], [1], [0, 0, 1, 1], [], []>} : vector<16x32xf32>, vector<32x64xf32>, vector<16x64xf32> -> vector<16x64xf32>
    %268 = vector.broadcast %165 : vector<1x64xf32> to vector<16x64xf32>
    %269 = arith.addf %267, %268 : vector<16x64xf32>
    %cst_83 = arith.constant 0.000000e+00 : f32
    %270 = vector.broadcast %cst_83 : f32 to vector<16x64xf32>
    %271 = arith.maximumf %269, %270 : vector<16x64xf32>
    %cst_84 = arith.constant dense<0.000000e+00> : vector<16x32xf32>
    %272 = tpu.matmul %271, %159, %cst_84 {dimension_numbers = #tpu.dot_dimension_numbers<[1], [0], [0], [1], [0, 0, 1, 1], [], []>} : vector<16x64xf32>, vector<64x32xf32>, vector<16x32xf32> -> vector<16x32xf32>
    %273 = vector.broadcast %166 : vector<1x32xf32> to vector<16x32xf32>
    %274 = arith.addf %272, %273 : vector<16x32xf32>
    %275 = arith.addf %266, %274 : vector<16x32xf32>
    %cst_85 = arith.constant dense<0.000000e+00> : vector<16xf32>
    %276 = vector.multi_reduction <add>, %275, %cst_85 [1] : vector<16x32xf32> to vector<16xf32>
    %277 = vector.shape_cast %276 : vector<16xf32> to vector<16x1xf32>
    %cst_86 = arith.constant 3.200000e+01 : f32
    %278 = vector.broadcast %cst_86 : f32 to vector<16x1xf32>
    %279 = arith.divf %277, %278 : vector<16x1xf32>
    %280 = vector.broadcast %279 : vector<16x1xf32> to vector<16x32xf32>
    %281 = arith.subf %275, %280 : vector<16x32xf32>
    %282 = arith.mulf %281, %281 : vector<16x32xf32>
    %cst_87 = arith.constant dense<0.000000e+00> : vector<16xf32>
    %283 = vector.multi_reduction <add>, %282, %cst_87 [1] : vector<16x32xf32> to vector<16xf32>
    %284 = vector.shape_cast %283 : vector<16xf32> to vector<16x1xf32>
    %cst_88 = arith.constant 3.200000e+01 : f32
    %285 = vector.broadcast %cst_88 : f32 to vector<16x1xf32>
    %286 = arith.divf %284, %285 : vector<16x1xf32>
    %287 = vector.broadcast %279 : vector<16x1xf32> to vector<16x32xf32>
    %288 = arith.subf %275, %287 : vector<16x32xf32>
    %cst_89 = arith.constant 9.99999974E-6 : f32
    %289 = vector.broadcast %cst_89 : f32 to vector<16x1xf32>
    %290 = arith.addf %286, %289 : vector<16x1xf32>
    %291 = math.sqrt %290 : vector<16x1xf32>
    %292 = vector.broadcast %291 : vector<16x1xf32> to vector<16x32xf32>
    %293 = arith.divf %288, %292 : vector<16x32xf32>
    %294 = vector.broadcast %167 : vector<1x32xf32> to vector<16x32xf32>
    %295 = arith.mulf %293, %294 : vector<16x32xf32>
    %296 = vector.broadcast %168 : vector<1x32xf32> to vector<16x32xf32>
    %297 = arith.addf %295, %296 : vector<16x32xf32>
    %c0_90 = arith.constant 0 : index
    %c0_91 = arith.constant 0 : index
    %298 = vector.load %arg5[%c0_90, %c0_91] : memref<16x32xf32, #tpu.memory_space<vmem>>, vector<16x32xf32>
    tpu.vector_store %arg5[%c0_90, %c0_91], %297 {strides = array<i32>} : memref<16x32xf32, #tpu.memory_space<vmem>>, vector<16x32xf32>,
    return
  }
}

</mosaic_0001>

<llo_original>
// kernel: transformer_encoder_forward.1
$region0: #{transformer_encoder_forward.1}
  #allocation0 [shape = 'u32[]', space=smem, size = 0x4, offset = 0x4, fixed_abs, tag = 'smem constant byte address 0x4 - core index']
  #allocation1 [shape = 'u32[72,128]{1,0:T(1,128)}', space=vmem, size = 0x9000, scoped, tag = 'internal scratch']
  %s0 = inlined_call_operand.vmem [shape: f32[16,32], index: 0, kind: input, shape index: {}]
  %s1 = inlined_call_operand.vmem [shape: f32[16,16], index: 1, kind: input, shape index: {}]
  %s2 = inlined_call_operand.vmem [shape: f32[2,32,192], index: 2, kind: input, shape index: {}]
  %s3 = inlined_call_operand.vmem [shape: f32[2,96,32], index: 3, kind: input, shape index: {}]
  %s4 = inlined_call_operand.vmem [shape: f32[2,8,96], index: 4, kind: input, shape index: {}]
  %s5 = inlined_call_operand.hbm [shape: f32[16,32], index: 5, kind: output, shape index: {}]
  %s6 = sld [smem:[#allocation0]]
  $region30: #{transformer_encoder_forward.1} parent=0
    _
  %s8 = ssub.s32 1, %s6
  %s9 = scalar_select 0, %s8, %s6
  $region1: #{transformer_encoder_forward.1} parent=0
    #allocation2 [shape = 'u8[8192]{0}', space=vmem, size = 0x2000, scoped, tag = 'output window, operand 0, single buffered']
    #allocation3 [shape = 's32[1]{0}', space=sflag, size = 0x4, scoped, tag = 'scoped memory for transformer_encoder_forward.1']
    %10 = vsyncpa [#allocation3], 0
    // Predicated region
    $region2: #{transformer_encoder_forward.1} parent=1 // pred_check
      _
    $region3: #{transformer_encoder_forward.1} parent=1 // pred_check_branch
      %12 = sbr.rel (0) target = $region5
    $region4: #{transformer_encoder_forward.1} parent=1 // pred_region
      _
    $region5: #{transformer_encoder_forward.1} parent=1 // pred_fallthru
      _
    // Predicated region
    $region6: #{transformer_encoder_forward.1} parent=1 // pred_check
      _
    $region7: #{transformer_encoder_forward.1} parent=1 // pred_check_branch
      %14 = sbr.rel (0) target = $region9
    $region8: #{transformer_encoder_forward.1} parent=1 // pred_region
      _
    $region9: #{transformer_encoder_forward.1} parent=1 // pred_fallthru
      _
    // Predicated region
    $region10: #{transformer_encoder_forward.1} parent=1 // pred_check
      _
    $region11: #{transformer_encoder_forward.1} parent=1 // pred_check_branch
      %16 = sbr.rel (0) target = $region13
    $region12: #{transformer_encoder_forward.1} parent=1 // pred_region
      _
    $region13: #{transformer_encoder_forward.1} parent=1 // pred_fallthru
      _
    // Predicated region
    $region14: #{transformer_encoder_forward.1} parent=1 // pred_check
      _
    $region15: #{transformer_encoder_forward.1} parent=1 // pred_check_branch
      %18 = sbr.rel (0) target = $region17
    $region16: #{transformer_encoder_forward.1} parent=1 // pred_region
      _
    $region17: #{transformer_encoder_forward.1} parent=1 // pred_fallthru
      _
    // Predicated region
    $region18: #{transformer_encoder_forward.1} parent=1 // pred_check
      _
    $region19: #{transformer_encoder_forward.1} parent=1 // pred_check_branch
      %20 = sbr.rel (0) target = $region21
    $region20: #{transformer_encoder_forward.1} parent=1 // pred_region
      _
    $region21: #{transformer_encoder_forward.1} parent=1 // pred_fallthru
      _
    %v21 = vld [vmem:[%s0] sm:$0xff]
    %v22 = vld [vmem:[%s0 + $0x8] sm:$0xff]
    %v23 = vld [vmem:[%s1] sm:$0xff]
    %v24 = vld [vmem:[%s1 + $0x8] sm:$0xff]
    %vm25 = vcmp.ne.f32.partialorder %v23, 0.0
    %vm26 = vcmp.ne.f32.partialorder %v24, 0.0
    %v27 = vld [vmem:[%s2] sm:$0xff]
    %v28 = vld [vmem:[%s2 + $0x8] sm:$0xff]
    %v29 = vld [vmem:[%s2 + $0x10] sm:$0xff]
    %v30 = vld [vmem:[%s2 + $0x18] sm:$0xff]
    %v31 = vld [vmem:[%s2 + $0x20] sm:$0xff]
    %v32 = vld [vmem:[%s2 + $0x28] sm:$0xff]
    %v33 = vld [vmem:[%s2 + $0x30] sm:$0xff]
    %v34 = vld [vmem:[%s2 + $0x38] sm:$0xff]
    %v35 = vld [vmem:[%s3] sm:$0xff]
    %v36 = vld [vmem:[%s3 + $0x8] sm:$0xff]
    %v37 = vld [vmem:[%s3 + $0x10] sm:$0xff]
    %v38 = vld [vmem:[%s3 + $0x18] sm:$0xff]
    %v39 = vld [vmem:[%s3 + $0x20] sm:$0xff]
    %v40 = vld [vmem:[%s3 + $0x28] sm:$0xff]
    %v41 = vld [vmem:[%s3 + $0x30] sm:$0xff]
    %v42 = vld [vmem:[%s3 + $0x38] sm:$0xff]
    %v43 = vld [vmem:[%s3 + $0x40] sm:$0xff]
    %v44 = vld [vmem:[%s3 + $0x48] sm:$0xff]
    %v45 = vld [vmem:[%s3 + $0x50] sm:$0xff]
    %v46 = vld [vmem:[%s3 + $0x58] sm:$0xff]
    %v47 = vld [vmem:[%s4] sm:$0xff]
    %v48 = vperm.slane %v47, 0
    %vm49 = vcmask 261120
    %v51 = vsel %vm49, %v21, 0
    %v54 = vsel %vm49, %v22, 0
    %56 = vmatpush.msra.mxu0 0.0
    %57 = vmatpush.msra.mxu0 0.0
    %58 = vmatpush.msra.mxu0 0.0
    %59 = vmatpush.msra.mxu0 0.0
    %60 = vmatpush.msra.mxu0 0.0
    %61 = vmatpush.msra.mxu0 0.0
    %62 = vmatpush.msra.mxu0 0.0
    %63 = vmatpush.msra.mxu0 0.0
    %64 = vmatpush.msra.mxu0 0.0
    %65 = vmatpush.msra.mxu0 0.0
    %66 = vmatpush.msra.mxu0 0.0
    %67 = vmatpush.msra.mxu0 0.0
    %68 = vmatpush.msra.mxu0 %v33
    %69 = vmatpush.msra.mxu0 %v31
    %70 = vmatpush.msra.mxu0 %v29
    %71 = vmatpush.msra.mxu0 %v27
    %72 = vmatmul.f32.gmra.mxu0 %v51
    %v73 = vpop.f32.mrf.mxu0
    %v74 = vadd.f32 %v48, %v73
    %75 = vmatmul.f32.gmra.mxu0 %v54
    %v76 = vpop.f32.mrf.mxu0
    %v77 = vadd.f32 %v48, %v76
    %78 = vdwg.mxu0
    %81 = vrot.lane.b32.xlu0 %v74, 96
    %v82 = vpop.permute.xlu0 %81
    %83 = vrot.lane.b32.xlu0 %v77, 96
    %v84 = vpop.permute.xlu0 %83
    %vm85 = vcmask 64512
    %v86 = vsel %vm85, %v74, 0
    %v88 = vsel %vm85, %v77, 0
    %v90 = vsel %vm85, %v82, 0
    %v92 = vsel %vm85, %v84, 0
    %94 = vmatpush.xpose.msra.mxu0 0.0
    %95 = vmatpush.xpose.msra.mxu0 0.0
    %96 = vmatpush.xpose.msra.mxu0 0.0
    %97 = vmatpush.xpose.msra.mxu0 0.0
    %98 = vmatpush.xpose.msra.mxu0 0.0
    %99 = vmatpush.xpose.msra.mxu0 0.0
    %100 = vmatpush.xpose.msra.mxu0 0.0
    %101 = vmatpush.xpose.msra.mxu0 0.0
    %102 = vmatpush.xpose.msra.mxu0 0.0
    %103 = vmatpush.xpose.msra.mxu0 0.0
    %104 = vmatpush.xpose.msra.mxu0 0.0
    %105 = vmatpush.xpose.msra.mxu0 0.0
    %106 = vmatpush.xpose.msra.mxu0 0.0
    %107 = vmatpush.xpose.msra.mxu0 0.0
    %108 = vmatpush.xpose.msra.mxu0 %v92
    %109 = vmatpush.xpose.msra.mxu0 %v90
    %110 = vmatmul.f32.gmra.mxu0 %v86
    %v111 = vpop.f32.mrf.mxu0
    %v112 = vadd.f32 0.0, %v111
    %113 = vmatmul.f32.gmra.mxu0 %v88
    %v114 = vpop.f32.mrf.mxu0
    %v115 = vadd.f32 0.0, %v114
    %116 = vdwg.mxu0
    %v117 = vsel %vm25, %v112, -1e+30
    %v118 = vsel %vm26, %v115, -1e+30
    %vm119 = vcmask 130048
    %v120 = vsel %vm119, %v117, -inf
    %121 = vmax.xlane.f32.xlu0 %v120
    %v122 = vpop.xlane.xlu0 %121
    %v123 = vsel %vm119, %v118, -inf
    %124 = vmax.xlane.f32.xlu0 %v123
    %v125 = vpop.xlane.xlu0 %124
    %v126 = vsub.f32 %v117, %v122
    %v127 = vsub.f32 %v118, %v125
    %v128 = vmul.f32 %v126, 1.442695
    %v129 = vpow.pop %v128
    %v130 = vmul.f32 %v127, 1.442695
    %v131 = vpow.pop %v130
    %v132 = vsel %vm119, %v129, 0.0
    %133 = vadd.xlane.f32.xlu0 %v132
    %v134 = vpop.xlane.xlu0 %133
    %v135 = vsel %vm119, %v131, 0.0
    %136 = vadd.xlane.f32.xlu0 %v135
    %v137 = vpop.xlane.xlu0 %136
    %v138 = vrcp.pop %v134
    %v139 = vmul.f32 %v134, %v138
    %v140 = vsub.f32 1.0, %v139
    %v141 = vmul.f32 %v138, %v140
    %v142 = vadd.f32 %v138, %v141
    %vm143 = vweird.f32 %v134
    %vm144 = vweird.f32 %v138
    %vm145 = vmor %vm143, %vm144
    %v146 = vsel %vm145, %v138, %v142
    %v147 = vand.u32 2147483647, %v134
    %vm148 = vcmp.eq.f32.partialorder %v147, 8.507059e+37
    %v149 = vand.u32 %v134, 2147483648
    %v150 = vor.u32 1.1754944e-38, %v149
    %v151 = vsel %vm148, %v150, %v146
    %v152 = vrcp.pop %v137
    %v153 = vmul.f32 %v137, %v152
    %v154 = vsub.f32 1.0, %v153
    %v155 = vmul.f32 %v152, %v154
    %v156 = vadd.f32 %v152, %v155
    %vm157 = vweird.f32 %v137
    %vm158 = vweird.f32 %v152
    %vm159 = vmor %vm157, %vm158
    %v160 = vsel %vm159, %v152, %v156
    %v161 = vand.u32 2147483647, %v137
    %vm162 = vcmp.eq.f32.partialorder %v161, 8.507059e+37
    %v163 = vand.u32 %v137, 2147483648
    %v164 = vor.u32 1.1754944e-38, %v163
    %v165 = vsel %vm162, %v164, %v160
    %v166 = vmul.f32 %v129, %v151
    %v167 = vmul.f32 %v131, %v165
    %168 = vrot.lane.b32.xlu0 %v74, 64
    %v169 = vpop.permute.xlu0 %168
    %170 = vrot.lane.b32.xlu0 %v77, 64
    %v171 = vpop.permute.xlu0 %170
    %v175 = vsel %vm119, %v166, 0
    %v178 = vsel %vm119, %v167, 0
    %180 = vmatpush.msra.mxu0 0.0
    %181 = vmatpush.msra.mxu0 0.0
    %182 = vmatpush.msra.mxu0 0.0
    %183 = vmatpush.msra.mxu0 0.0
    %184 = vmatpush.msra.mxu0 0.0
    %185 = vmatpush.msra.mxu0 0.0
    %186 = vmatpush.msra.mxu0 0.0
    %187 = vmatpush.msra.mxu0 0.0
    %188 = vmatpush.msra.mxu0 0.0
    %189 = vmatpush.msra.mxu0 0.0
    %190 = vmatpush.msra.mxu0 0.0
    %191 = vmatpush.msra.mxu0 0.0
    %192 = vmatpush.msra.mxu0 0.0
    %193 = vmatpush.msra.mxu0 0.0
    %194 = vmatpush.msra.mxu0 %v171
    %195 = vmatpush.msra.mxu0 %v169
    %196 = vmatmul.f32.gmra.mxu0 %v175
    %v197 = vpop.f32.mrf.mxu0
    %v198 = vadd.f32 0.0, %v197
    %199 = vmatmul.f32.gmra.mxu0 %v178
    %v200 = vpop.f32.mrf.mxu0
    %v201 = vadd.f32 0.0, %v200
    %202 = vdwg.mxu0
    %203 = vrot.lane.b32.xlu0 %v74, 120
    %v204 = vpop.permute.xlu0 %203
    %205 = vrot.lane.b32.xlu0 %v77, 120
    %v206 = vpop.permute.xlu0 %205
    %207 = vrot.lane.b32.xlu0 %v74, 88
    %v208 = vpop.permute.xlu0 %207
    %209 = vrot.lane.b32.xlu0 %v77, 88
    %v210 = vpop.permute.xlu0 %209
    %v211 = vsel %vm85, %v204, 0
    %v213 = vsel %vm85, %v206, 0
    %v215 = vsel %vm85, %v208, 0
    %v217 = vsel %vm85, %v210, 0
    %219 = vmatpush.xpose.msra.mxu0 0.0
    %220 = vmatpush.xpose.msra.mxu0 0.0
    %221 = vmatpush.xpose.msra.mxu0 0.0
    %222 = vmatpush.xpose.msra.mxu0 0.0
    %223 = vmatpush.xpose.msra.mxu0 0.0
    %224 = vmatpush.xpose.msra.mxu0 0.0
    %225 = vmatpush.xpose.msra.mxu0 0.0
    %226 = vmatpush.xpose.msra.mxu0 0.0
    %227 = vmatpush.xpose.msra.mxu0 0.0
    %228 = vmatpush.xpose.msra.mxu0 0.0
    %229 = vmatpush.xpose.msra.mxu0 0.0
    %230 = vmatpush.xpose.msra.mxu0 0.0
    %231 = vmatpush.xpose.msra.mxu0 0.0
    %232 = vmatpush.xpose.msra.mxu0 0.0
    %233 = vmatpush.xpose.msra.mxu0 %v217
    %234 = vmatpush.xpose.msra.mxu0 %v215
    %235 = vmatmul.f32.gmra.mxu0 %v211
    %v236 = vpop.f32.mrf.mxu0
    %v237 = vadd.f32 0.0, %v236
    %238 = vmatmul.f32.gmra.mxu0 %v213
    %v239 = vpop.f32.mrf.mxu0
    %v240 = vadd.f32 0.0, %v239
    %241 = vdwg.mxu0
    %v242 = vsel %vm25, %v237, -1e+30
    %v243 = vsel %vm26, %v240, -1e+30
    %v244 = vsel %vm119, %v242, -inf
    %245 = vmax.xlane.f32.xlu0 %v244
    %v246 = vpop.xlane.xlu0 %245
    %v247 = vsel %vm119, %v243, -inf
    %248 = vmax.xlane.f32.xlu0 %v247
    %v249 = vpop.xlane.xlu0 %248
    %v250 = vsub.f32 %v242, %v246
    %v251 = vsub.f32 %v243, %v249
    %v252 = vmul.f32 %v250, 1.442695
    %v253 = vpow.pop %v252
    %v254 = vmul.f32 %v251, 1.442695
    %v255 = vpow.pop %v254
    %v256 = vsel %vm119, %v253, 0.0
    %257 = vadd.xlane.f32.xlu0 %v256
    %v258 = vpop.xlane.xlu0 %257
    %v259 = vsel %vm119, %v255, 0.0
    %260 = vadd.xlane.f32.xlu0 %v259
    %v261 = vpop.xlane.xlu0 %260
    %v262 = vrcp.pop %v258
    %v263 = vmul.f32 %v258, %v262
    %v264 = vsub.f32 1.0, %v263
    %v265 = vmul.f32 %v262, %v264
    %v266 = vadd.f32 %v262, %v265
    %vm267 = vweird.f32 %v258
    %vm268 = vweird.f32 %v262
    %vm269 = vmor %vm267, %vm268
    %v270 = vsel %vm269, %v262, %v266
    %v271 = vand.u32 2147483647, %v258
    %vm272 = vcmp.eq.f32.partialorder %v271, 8.507059e+37
    %v273 = vand.u32 %v258, 2147483648
    %v274 = vor.u32 1.1754944e-38, %v273
    %v275 = vsel %vm272, %v274, %v270
    %v276 = vrcp.pop %v261
    %v277 = vmul.f32 %v261, %v276
    %v278 = vsub.f32 1.0, %v277
    %v279 = vmul.f32 %v276, %v278
    %v280 = vadd.f32 %v276, %v279
    %vm281 = vweird.f32 %v261
    %vm282 = vweird.f32 %v276
    %vm283 = vmor %vm281, %vm282
    %v284 = vsel %vm283, %v276, %v280
    %v285 = vand.u32 2147483647, %v261
    %vm286 = vcmp.eq.f32.partialorder %v285, 8.507059e+37
    %v287 = vand.u32 %v261, 2147483648
    %v288 = vor.u32 1.1754944e-38, %v287
    %v289 = vsel %vm286, %v288, %v284
    %v290 = vmul.f32 %v253, %v275
    %v291 = vmul.f32 %v255, %v289
    %292 = vrot.lane.b32.xlu0 %v74, 56
    %v293 = vpop.permute.xlu0 %292
    %294 = vrot.lane.b32.xlu0 %v77, 56
    %v295 = vpop.permute.xlu0 %294
    %v299 = vsel %vm119, %v290, 0
    %v302 = vsel %vm119, %v291, 0
    %304 = vmatpush.msra.mxu0 0.0
    %305 = vmatpush.msra.mxu0 0.0
    %306 = vmatpush.msra.mxu0 0.0
    %307 = vmatpush.msra.mxu0 0.0
    %308 = vmatpush.msra.mxu0 0.0
    %309 = vmatpush.msra.mxu0 0.0
    %310 = vmatpush.msra.mxu0 0.0
    %311 = vmatpush.msra.mxu0 0.0
    %312 = vmatpush.msra.mxu0 0.0
    %313 = vmatpush.msra.mxu0 0.0
    %314 = vmatpush.msra.mxu0 0.0
    %315 = vmatpush.msra.mxu0 0.0
    %316 = vmatpush.msra.mxu0 0.0
    %317 = vmatpush.msra.mxu0 0.0
    %318 = vmatpush.msra.mxu0 %v295
    %319 = vmatpush.msra.mxu0 %v293
    %320 = vmatmul.f32.gmra.mxu0 %v299
    %v321 = vpop.f32.mrf.mxu0
    %v322 = vadd.f32 0.0, %v321
    %323 = vmatmul.f32.gmra.mxu0 %v302
    %v324 = vpop.f32.mrf.mxu0
    %v325 = vadd.f32 0.0, %v324
    %326 = vdwg.mxu0
    %327 = vrot.lane.b32.xlu0 %v74, 112
    %v328 = vpop.permute.xlu0 %327
    %329 = vrot.lane.b32.xlu0 %v77, 112
    %v330 = vpop.permute.xlu0 %329
    %331 = vrot.lane.b32.xlu0 %v74, 80
    %v332 = vpop.permute.xlu0 %331
    %333 = vrot.lane.b32.xlu0 %v77, 80
    %v334 = vpop.permute.xlu0 %333
    %v335 = vsel %vm85, %v328, 0
    %v337 = vsel %vm85, %v330, 0
    %v339 = vsel %vm85, %v332, 0
    %v341 = vsel %vm85, %v334, 0
    %343 = vmatpush.xpose.msra.mxu0 0.0
    %344 = vmatpush.xpose.msra.mxu0 0.0
    %345 = vmatpush.xpose.msra.mxu0 0.0
    %346 = vmatpush.xpose.msra.mxu0 0.0
    %347 = vmatpush.xpose.msra.mxu0 0.0
    %348 = vmatpush.xpose.msra.mxu0 0.0
    %349 = vmatpush.xpose.msra.mxu0 0.0
    %350 = vmatpush.xpose.msra.mxu0 0.0
    %351 = vmatpush.xpose.msra.mxu0 0.0
    %352 = vmatpush.xpose.msra.mxu0 0.0
    %353 = vmatpush.xpose.msra.mxu0 0.0
    %354 = vmatpush.xpose.msra.mxu0 0.0
    %355 = vmatpush.xpose.msra.mxu0 0.0
    %356 = vmatpush.xpose.msra.mxu0 0.0
    %357 = vmatpush.xpose.msra.mxu0 %v341
    %358 = vmatpush.xpose.msra.mxu0 %v339
    %359 = vmatmul.f32.gmra.mxu0 %v335
    %v360 = vpop.f32.mrf.mxu0
    %v361 = vadd.f32 0.0, %v360
    %362 = vmatmul.f32.gmra.mxu0 %v337
    %v363 = vpop.f32.mrf.mxu0
    %v364 = vadd.f32 0.0, %v363
    %365 = vdwg.mxu0
    %v366 = vsel %vm25, %v361, -1e+30
    %v367 = vsel %vm26, %v364, -1e+30
    %v368 = vsel %vm119, %v366, -inf
    %369 = vmax.xlane.f32.xlu0 %v368
    %v370 = vpop.xlane.xlu0 %369
    %v371 = vsel %vm119, %v367, -inf
    %372 = vmax.xlane.f32.xlu0 %v371
    %v373 = vpop.xlane.xlu0 %372
    %v374 = vsub.f32 %v366, %v370
    %v375 = vsub.f32 %v367, %v373
    %v376 = vmul.f32 %v374, 1.442695
    %v377 = vpow.pop %v376
    %v378 = vmul.f32 %v375, 1.442695
    %v379 = vpow.pop %v378
    %v380 = vsel %vm119, %v377, 0.0
    %381 = vadd.xlane.f32.xlu0 %v380
    %v382 = vpop.xlane.xlu0 %381
    %v383 = vsel %vm119, %v379, 0.0
    %384 = vadd.xlane.f32.xlu0 %v383
    %v385 = vpop.xlane.xlu0 %384
    %v386 = vrcp.pop %v382
    %v387 = vmul.f32 %v382, %v386
    %v388 = vsub.f32 1.0, %v387
    %v389 = vmul.f32 %v386, %v388
    %v390 = vadd.f32 %v386, %v389
    %vm391 = vweird.f32 %v382
    %vm392 = vweird.f32 %v386
    %vm393 = vmor %vm391, %vm392
    %v394 = vsel %vm393, %v386, %v390
    %v395 = vand.u32 2147483647, %v382
    %vm396 = vcmp.eq.f32.partialorder %v395, 8.507059e+37
    %v397 = vand.u32 %v382, 2147483648
    %v398 = vor.u32 1.1754944e-38, %v397
    %v399 = vsel %vm396, %v398, %v394
    %v400 = vrcp.pop %v385
    %v401 = vmul.f32 %v385, %v400
    %v402 = vsub.f32 1.0, %v401
    %v403 = vmul.f32 %v400, %v402
    %v404 = vadd.f32 %v400, %v403
    %vm405 = vweird.f32 %v385
    %vm406 = vweird.f32 %v400
    %vm407 = vmor %vm405, %vm406
    %v408 = vsel %vm407, %v400, %v404
    %v409 = vand.u32 2147483647, %v385
    %vm410 = vcmp.eq.f32.partialorder %v409, 8.507059e+37
    %v411 = vand.u32 %v385, 2147483648
    %v412 = vor.u32 1.1754944e-38, %v411
    %v413 = vsel %vm410, %v412, %v408
    %v414 = vmul.f32 %v377, %v399
    %v415 = vmul.f32 %v379, %v413
    %416 = vrot.lane.b32.xlu0 %v74, 48
    %v417 = vpop.permute.xlu0 %416
    %418 = vrot.lane.b32.xlu0 %v77, 48
    %v419 = vpop.permute.xlu0 %418
    %v423 = vsel %vm119, %v414, 0
    %v426 = vsel %vm119, %v415, 0
    %428 = vmatpush.msra.mxu0 0.0
    %429 = vmatpush.msra.mxu0 0.0
    %430 = vmatpush.msra.mxu0 0.0
    %431 = vmatpush.msra.mxu0 0.0
    %432 = vmatpush.msra.mxu0 0.0
    %433 = vmatpush.msra.mxu0 0.0
    %434 = vmatpush.msra.mxu0 0.0
    %435 = vmatpush.msra.mxu0 0.0
    %436 = vmatpush.msra.mxu0 0.0
    %437 = vmatpush.msra.mxu0 0.0
    %438 = vmatpush.msra.mxu0 0.0
    %439 = vmatpush.msra.mxu0 0.0
    %440 = vmatpush.msra.mxu0 0.0
    %441 = vmatpush.msra.mxu0 0.0
    %442 = vmatpush.msra.mxu0 %v419
    %443 = vmatpush.msra.mxu0 %v417
    %444 = vmatmul.f32.gmra.mxu0 %v423
    %v445 = vpop.f32.mrf.mxu0
    %v446 = vadd.f32 0.0, %v445
    %447 = vmatmul.f32.gmra.mxu0 %v426
    %v448 = vpop.f32.mrf.mxu0
    %v449 = vadd.f32 0.0, %v448
    %450 = vdwg.mxu0
    %451 = vrot.lane.b32.xlu0 %v74, 104
    %v452 = vpop.permute.xlu0 %451
    %453 = vrot.lane.b32.xlu0 %v77, 104
    %v454 = vpop.permute.xlu0 %453
    %455 = vrot.lane.b32.xlu0 %v74, 72
    %v456 = vpop.permute.xlu0 %455
    %457 = vrot.lane.b32.xlu0 %v77, 72
    %v458 = vpop.permute.xlu0 %457
    %v459 = vsel %vm85, %v452, 0
    %v461 = vsel %vm85, %v454, 0
    %v463 = vsel %vm85, %v456, 0
    %v465 = vsel %vm85, %v458, 0
    %467 = vmatpush.xpose.msra.mxu0 0.0
    %468 = vmatpush.xpose.msra.mxu0 0.0
    %469 = vmatpush.xpose.msra.mxu0 0.0
    %470 = vmatpush.xpose.msra.mxu0 0.0
    %471 = vmatpush.xpose.msra.mxu0 0.0
    %472 = vmatpush.xpose.msra.mxu0 0.0
    %473 = vmatpush.xpose.msra.mxu0 0.0
    %474 = vmatpush.xpose.msra.mxu0 0.0
    %475 = vmatpush.xpose.msra.mxu0 0.0
    %476 = vmatpush.xpose.msra.mxu0 0.0
    %477 = vmatpush.xpose.msra.mxu0 0.0
    %478 = vmatpush.xpose.msra.mxu0 0.0
    %479 = vmatpush.xpose.msra.mxu0 0.0
    %480 = vmatpush.xpose.msra.mxu0 0.0
    %481 = vmatpush.xpose.msra.mxu0 %v465
    %482 = vmatpush.xpose.msra.mxu0 %v463
    %483 = vmatmul.f32.gmra.mxu0 %v459
    %v484 = vpop.f32.mrf.mxu0
    %v485 = vadd.f32 0.0, %v484
    %486 = vmatmul.f32.gmra.mxu0 %v461
    %v487 = vpop.f32.mrf.mxu0
    %v488 = vadd.f32 0.0, %v487
    %489 = vdwg.mxu0
    %v490 = vsel %vm25, %v485, -1e+30
    %v491 = vsel %vm26, %v488, -1e+30
    %v492 = vsel %vm119, %v490, -inf
    %493 = vmax.xlane.f32.xlu0 %v492
    %v494 = vpop.xlane.xlu0 %493
    %v495 = vsel %vm119, %v491, -inf
    %496 = vmax.xlane.f32.xlu0 %v495
    %v497 = vpop.xlane.xlu0 %496
    %v498 = vsub.f32 %v490, %v494
    %v499 = vsub.f32 %v491, %v497
    %v500 = vmul.f32 %v498, 1.442695
    %v501 = vpow.pop %v500
    %v502 = vmul.f32 %v499, 1.442695
    %v503 = vpow.pop %v502
    %v504 = vsel %vm119, %v501, 0.0
    %505 = vadd.xlane.f32.xlu0 %v504
    %v506 = vpop.xlane.xlu0 %505
    %v507 = vsel %vm119, %v503, 0.0
    %508 = vadd.xlane.f32.xlu0 %v507
    %v509 = vpop.xlane.xlu0 %508
    %v510 = vrcp.pop %v506
    %v511 = vmul.f32 %v506, %v510
    %v512 = vsub.f32 1.0, %v511
    %v513 = vmul.f32 %v510, %v512
    %v514 = vadd.f32 %v510, %v513
    %vm515 = vweird.f32 %v506
    %vm516 = vweird.f32 %v510
    %vm517 = vmor %vm515, %vm516
    %v518 = vsel %vm517, %v510, %v514
    %v519 = vand.u32 2147483647, %v506
    %vm520 = vcmp.eq.f32.partialorder %v519, 8.507059e+37
    %v521 = vand.u32 %v506, 2147483648
    %v522 = vor.u32 1.1754944e-38, %v521
    %v523 = vsel %vm520, %v522, %v518
    %v524 = vrcp.pop %v509
    %v525 = vmul.f32 %v509, %v524
    %v526 = vsub.f32 1.0, %v525
    %v527 = vmul.f32 %v524, %v526
    %v528 = vadd.f32 %v524, %v527
    %vm529 = vweird.f32 %v509
    %vm530 = vweird.f32 %v524
    %vm531 = vmor %vm529, %vm530
    %v532 = vsel %vm531, %v524, %v528
    %v533 = vand.u32 2147483647, %v509
    %vm534 = vcmp.eq.f32.partialorder %v533, 8.507059e+37
    %v535 = vand.u32 %v509, 2147483648
    %v536 = vor.u32 1.1754944e-38, %v535
    %v537 = vsel %vm534, %v536, %v532
    %v538 = vmul.f32 %v501, %v523
    %v539 = vmul.f32 %v503, %v537
    %540 = vrot.lane.b32.xlu0 %v74, 40
    %v541 = vpop.permute.xlu0 %540
    %542 = vrot.lane.b32.xlu0 %v77, 40
    %v543 = vpop.permute.xlu0 %542
    %v547 = vsel %vm119, %v538, 0
    %v550 = vsel %vm119, %v539, 0
    %552 = vmatpush.msra.mxu0 0.0
    %553 = vmatpush.msra.mxu0 0.0
    %554 = vmatpush.msra.mxu0 0.0
    %555 = vmatpush.msra.mxu0 0.0
    %556 = vmatpush.msra.mxu0 0.0
    %557 = vmatpush.msra.mxu0 0.0
    %558 = vmatpush.msra.mxu0 0.0
    %559 = vmatpush.msra.mxu0 0.0
    %560 = vmatpush.msra.mxu0 0.0
    %561 = vmatpush.msra.mxu0 0.0
    %562 = vmatpush.msra.mxu0 0.0
    %563 = vmatpush.msra.mxu0 0.0
    %564 = vmatpush.msra.mxu0 0.0
    %565 = vmatpush.msra.mxu0 0.0
    %566 = vmatpush.msra.mxu0 %v543
    %567 = vmatpush.msra.mxu0 %v541
    %568 = vmatmul.f32.gmra.mxu0 %v547
    %v569 = vpop.f32.mrf.mxu0
    %v570 = vadd.f32 0.0, %v569
    %571 = vmatmul.f32.gmra.mxu0 %v550
    %v572 = vpop.f32.mrf.mxu0
    %v573 = vadd.f32 0.0, %v572
    %574 = vdwg.mxu0
    %577 = vrot.lane.b32.xlu0 %v322, 8
    %v578 = vpop.permute.xlu0 %577
    %579 = vrot.lane.b32.xlu0 %v325, 8
    %v580 = vpop.permute.xlu0 %579
    %585 = vrot.lane.b32.xlu0 %v446, 16
    %v586 = vpop.permute.xlu0 %585
    %587 = vrot.lane.b32.xlu0 %v449, 16
    %v588 = vpop.permute.xlu0 %587
    %593 = vrot.lane.b32.xlu0 %v570, 24
    %v594 = vpop.permute.xlu0 %593
    %595 = vrot.lane.b32.xlu0 %v573, 24
    %v596 = vpop.permute.xlu0 %595
    %v599 = vsel %vm85, %v198, %v578
    %v600 = vsel %vm85, %v201, %v580
    %v601 = vsel %vm119, %v599, %v586
    %v602 = vsel %vm119, %v600, %v588
    %vm603 = vcmask 195584
    %v604 = vsel %vm603, %v601, %v594
    %v605 = vsel %vm603, %v602, %v596
    %v606 = vperm.slane %v47, 1
    %v608 = vsel %vm49, %v604, 0
    %v611 = vsel %vm49, %v605, 0
    %613 = vmatpush.msra.mxu0 0.0
    %614 = vmatpush.msra.mxu0 0.0
    %615 = vmatpush.msra.mxu0 0.0
    %616 = vmatpush.msra.mxu0 0.0
    %617 = vmatpush.msra.mxu0 0.0
    %618 = vmatpush.msra.mxu0 0.0
    %619 = vmatpush.msra.mxu0 0.0
    %620 = vmatpush.msra.mxu0 0.0
    %621 = vmatpush.msra.mxu0 0.0
    %622 = vmatpush.msra.mxu0 0.0
    %623 = vmatpush.msra.mxu0 0.0
    %624 = vmatpush.msra.mxu0 0.0
    %625 = vmatpush.msra.mxu0 %v46
    %626 = vmatpush.msra.mxu0 %v45
    %627 = vmatpush.msra.mxu0 %v44
    %628 = vmatpush.msra.mxu0 %v43
    %629 = vmatmul.f32.gmra.mxu0 %v608
    %v630 = vpop.f32.mrf.mxu0
    %v631 = vadd.f32 %v606, %v630
    %632 = vmatmul.f32.gmra.mxu0 %v611
    %v633 = vpop.f32.mrf.mxu0
    %v634 = vadd.f32 %v606, %v633
    %635 = vdwg.mxu0
    %v636 = vadd.f32 %v21, %v631
    %v637 = vadd.f32 %v22, %v634
    %v638 = vsel %vm49, %v636, 0.0
    %639 = vadd.xlane.f32.xlu0 %v638
    %v640 = vpop.xlane.xlu0 %639
    %v641 = vsel %vm49, %v637, 0.0
    %642 = vadd.xlane.f32.xlu0 %v641
    %v643 = vpop.xlane.xlu0 %642
    %v644 = vrcp.pop 32.0
    %v645 = vmul.f32 32.0, %v644
    %v646 = vsub.f32 1.0, %v645
    %v647 = vmul.f32 %v644, %v646
    %v648 = vadd.f32 %v644, %v647
    %vm649 = vweird.f32 %v644
    %v650 = vsel %vm649, %v644, %v648
    %v651 = vmul.f32 %v640, %v650
    %v652 = vmul.f32 %v643, %v650
    %v653 = vsub.f32 %v636, %v651
    %v654 = vsub.f32 %v637, %v652
    %v655 = vmul.f32 %v653, %v653
    %v656 = vmul.f32 %v654, %v654
    %v657 = vsel %vm49, %v655, 0.0
    %658 = vadd.xlane.f32.xlu0 %v657
    %v659 = vpop.xlane.xlu0 %658
    %v660 = vsel %vm49, %v656, 0.0
    %661 = vadd.xlane.f32.xlu0 %v660
    %v662 = vpop.xlane.xlu0 %661
    %v663 = vmul.f32 %v659, %v650
    %v664 = vmul.f32 %v662, %v650
    %v665 = vadd.f32 %v663, 1e-05
    %v666 = vadd.f32 %v664, 1e-05
    %v667 = vrsqrt.pop %v665
    %v668 = vmul.f32 %v667, %v665
    %v669 = vmul.f32 %v668, %v667
    %v670 = vmul.f32 0.5, %v669
    %v671 = vsub.f32 1.5, %v670
    %v672 = vmul.f32 %v667, %v671
    %v673 = vmul.f32 %v665, %v672
    %vm674 = vcmp.eq.f32.partialorder %v665, inf
    %v675 = vsel %vm674, %v665, %v673
    %vm676 = vcmp.eq.f32.partialorder %v665, 0.0
    %v677 = vand.u32 %v665, 2147483648
    %v678 = vsel %vm676, %v677, %v675
    %v679 = vrsqrt.pop %v666
    %v680 = vmul.f32 %v679, %v666
    %v681 = vmul.f32 %v680, %v679
    %v682 = vmul.f32 0.5, %v681
    %v683 = vsub.f32 1.5, %v682
    %v684 = vmul.f32 %v679, %v683
    %v685 = vmul.f32 %v666, %v684
    %vm686 = vcmp.eq.f32.partialorder %v666, inf
    %v687 = vsel %vm686, %v666, %v685
    %vm688 = vcmp.eq.f32.partialorder %v666, 0.0
    %v689 = vand.u32 %v666, 2147483648
    %v690 = vsel %vm688, %v689, %v687
    %v691 = vrcp.pop %v678
    %v692 = vmul.f32 %v678, %v691
    %v693 = vsub.f32 1.0, %v692
    %v694 = vmul.f32 %v691, %v693
    %v695 = vadd.f32 %v691, %v694
    %vm696 = vweird.f32 %v678
    %vm697 = vweird.f32 %v691
    %vm698 = vmor %vm696, %vm697
    %v699 = vsel %vm698, %v691, %v695
    %v700 = vand.u32 2147483647, %v678
    %vm701 = vcmp.eq.f32.partialorder %v700, 8.507059e+37
    %v702 = vand.u32 %v678, 2147483648
    %v703 = vor.u32 1.1754944e-38, %v702
    %v704 = vsel %vm701, %v703, %v699
    %v705 = vmul.f32 %v653, %v704
    %v706 = vrcp.pop %v690
    %v707 = vmul.f32 %v690, %v706
    %v708 = vsub.f32 1.0, %v707
    %v709 = vmul.f32 %v706, %v708
    %v710 = vadd.f32 %v706, %v709
    %vm711 = vweird.f32 %v690
    %vm712 = vweird.f32 %v706
    %vm713 = vmor %vm711, %vm712
    %v714 = vsel %vm713, %v706, %v710
    %v715 = vand.u32 2147483647, %v690
    %vm716 = vcmp.eq.f32.partialorder %v715, 8.507059e+37
    %v717 = vand.u32 %v690, 2147483648
    %v718 = vor.u32 1.1754944e-38, %v717
    %v719 = vsel %vm716, %v718, %v714
    %v720 = vmul.f32 %v654, %v719
    %v721 = vperm.slane %v47, 2
    %v722 = vmul.f32 %v705, %v721
    %v723 = vmul.f32 %v720, %v721
    %v724 = vperm.slane %v47, 3
    %v725 = vadd.f32 %v722, %v724
    %v726 = vadd.f32 %v723, %v724
    %v727 = vperm.slane %v47, 4
    %v729 = vsel %vm49, %v725, 0
    %v732 = vsel %vm49, %v726, 0
    %734 = vmatpush.msra.mxu0 0.0
    %735 = vmatpush.msra.mxu0 0.0
    %736 = vmatpush.msra.mxu0 0.0
    %737 = vmatpush.msra.mxu0 0.0
    %738 = vmatpush.msra.mxu0 0.0
    %739 = vmatpush.msra.mxu0 0.0
    %740 = vmatpush.msra.mxu0 0.0
    %741 = vmatpush.msra.mxu0 0.0
    %742 = vmatpush.msra.mxu0 0.0
    %743 = vmatpush.msra.mxu0 0.0
    %744 = vmatpush.msra.mxu0 0.0
    %745 = vmatpush.msra.mxu0 0.0
    %746 = vmatpush.msra.mxu0 %v34
    %747 = vmatpush.msra.mxu0 %v32
    %748 = vmatpush.msra.mxu0 %v30
    %749 = vmatpush.msra.mxu0 %v28
    %750 = vmatmul.f32.gmra.mxu0 %v729
    %v751 = vpop.f32.mrf.mxu0
    %v752 = vadd.f32 %v727, %v751
    %753 = vmatmul.f32.gmra.mxu0 %v732
    %v754 = vpop.f32.mrf.mxu0
    %v755 = vadd.f32 %v727, %v754
    %756 = vdwg.mxu0
    %v757 = vmax.f32 %v752, 0.0
    %v758 = vmax.f32 %v755, 0.0
    %v759 = vperm.slane %v47, 5
    %vm760 = vcmask 523264
    %v762 = vsel %vm760, %v757, 0
    %v765 = vsel %vm760, %v758, 0
    %767 = vmatpush.msra.mxu0 0.0
    %768 = vmatpush.msra.mxu0 0.0
    %769 = vmatpush.msra.mxu0 0.0
    %770 = vmatpush.msra.mxu0 0.0
    %771 = vmatpush.msra.mxu0 0.0
    %772 = vmatpush.msra.mxu0 0.0
    %773 = vmatpush.msra.mxu0 0.0
    %774 = vmatpush.msra.mxu0 0.0
    %775 = vmatpush.msra.mxu0 %v42
    %776 = vmatpush.msra.mxu0 %v41
    %777 = vmatpush.msra.mxu0 %v40
    %778 = vmatpush.msra.mxu0 %v39
    %779 = vmatpush.msra.mxu0 %v38
    %780 = vmatpush.msra.mxu0 %v37
    %781 = vmatpush.msra.mxu0 %v36
    %782 = vmatpush.msra.mxu0 %v35
    %783 = vmatmul.f32.gmra.mxu0 %v762
    %v784 = vpop.f32.mrf.mxu0
    %v785 = vadd.f32 %v759, %v784
    %786 = vmatmul.f32.gmra.mxu0 %v765
    %v787 = vpop.f32.mrf.mxu0
    %v788 = vadd.f32 %v759, %v787
    %789 = vdwg.mxu0
    %v790 = vadd.f32 %v725, %v785
    %v791 = vadd.f32 %v726, %v788
    %v792 = vsel %vm49, %v790, 0.0
    %793 = vadd.xlane.f32.xlu0 %v792
    %v794 = vpop.xlane.xlu0 %793
    %v795 = vsel %vm49, %v791, 0.0
    %796 = vadd.xlane.f32.xlu0 %v795
    %v797 = vpop.xlane.xlu0 %796
    %v798 = vmul.f32 %v794, %v650
    %v799 = vmul.f32 %v797, %v650
    %v800 = vsub.f32 %v790, %v798
    %v801 = vsub.f32 %v791, %v799
    %v802 = vmul.f32 %v800, %v800
    %v803 = vmul.f32 %v801, %v801
    %v804 = vsel %vm49, %v802, 0.0
    %805 = vadd.xlane.f32.xlu0 %v804
    %v806 = vpop.xlane.xlu0 %805
    %v807 = vsel %vm49, %v803, 0.0
    %808 = vadd.xlane.f32.xlu0 %v807
    %v809 = vpop.xlane.xlu0 %808
    %v810 = vmul.f32 %v806, %v650
    %v811 = vmul.f32 %v809, %v650
    %v812 = vadd.f32 %v810, 1e-05
    %v813 = vadd.f32 %v811, 1e-05
    %v814 = vrsqrt.pop %v812
    %v815 = vmul.f32 %v814, %v812
    %v816 = vmul.f32 %v815, %v814
    %v817 = vmul.f32 0.5, %v816
    %v818 = vsub.f32 1.5, %v817
    %v819 = vmul.f32 %v814, %v818
    %v820 = vmul.f32 %v812, %v819
    %vm821 = vcmp.eq.f32.partialorder %v812, inf
    %v822 = vsel %vm821, %v812, %v820
    %vm823 = vcmp.eq.f32.partialorder %v812, 0.0
    %v824 = vand.u32 %v812, 2147483648
    %v825 = vsel %vm823, %v824, %v822
    %v826 = vrsqrt.pop %v813
    %v827 = vmul.f32 %v826, %v813
    %v828 = vmul.f32 %v827, %v826
    %v829 = vmul.f32 0.5, %v828
    %v830 = vsub.f32 1.5, %v829
    %v831 = vmul.f32 %v826, %v830
    %v832 = vmul.f32 %v813, %v831
    %vm833 = vcmp.eq.f32.partialorder %v813, inf
    %v834 = vsel %vm833, %v813, %v832
    %vm835 = vcmp.eq.f32.partialorder %v813, 0.0
    %v836 = vand.u32 %v813, 2147483648
    %v837 = vsel %vm835, %v836, %v834
    %v838 = vrcp.pop %v825
    %v839 = vmul.f32 %v825, %v838
    %v840 = vsub.f32 1.0, %v839
    %v841 = vmul.f32 %v838, %v840
    %v842 = vadd.f32 %v838, %v841
    %vm843 = vweird.f32 %v825
    %vm844 = vweird.f32 %v838
    %vm845 = vmor %vm843, %vm844
    %v846 = vsel %vm845, %v838, %v842
    %v847 = vand.u32 2147483647, %v825
    %vm848 = vcmp.eq.f32.partialorder %v847, 8.507059e+37
    %v849 = vand.u32 %v825, 2147483648
    %v850 = vor.u32 1.1754944e-38, %v849
    %v851 = vsel %vm848, %v850, %v846
    %v852 = vmul.f32 %v800, %v851
    %v853 = vrcp.pop %v837
    %v854 = vmul.f32 %v837, %v853
    %v855 = vsub.f32 1.0, %v854
    %v856 = vmul.f32 %v853, %v855
    %v857 = vadd.f32 %v853, %v856
    %vm858 = vweird.f32 %v837
    %vm859 = vweird.f32 %v853
    %vm860 = vmor %vm858, %vm859
    %v861 = vsel %vm860, %v853, %v857
    %v862 = vand.u32 2147483647, %v837
    %vm863 = vcmp.eq.f32.partialorder %v862, 8.507059e+37
    %v864 = vand.u32 %v837, 2147483648
    %v865 = vor.u32 1.1754944e-38, %v864
    %v866 = vsel %vm863, %v865, %v861
    %v867 = vmul.f32 %v801, %v866
    %v868 = vperm.slane %v47, 6
    %v869 = vmul.f32 %v852, %v868
    %v870 = vmul.f32 %v867, %v868
    %v871 = vperm.slane %v47, 7
    %v872 = vadd.f32 %v869, %v871
    %v873 = vadd.f32 %v870, %v871
    %s874 = scalar_lea.vmem %s2, 64
    %v875 = vld [vmem:[%s874] sm:$0xff]
    %v876 = vld [vmem:[%s874 + $0x8] sm:$0xff]
    %v877 = vld [vmem:[%s874 + $0x10] sm:$0xff]
    %v878 = vld [vmem:[%s874 + $0x18] sm:$0xff]
    %v879 = vld [vmem:[%s874 + $0x20] sm:$0xff]
    %v880 = vld [vmem:[%s874 + $0x28] sm:$0xff]
    %v881 = vld [vmem:[%s874 + $0x30] sm:$0xff]
    %v882 = vld [vmem:[%s874 + $0x38] sm:$0xff]
    %s883 = scalar_lea.vmem %s3, 96
    %v884 = vld [vmem:[%s883] sm:$0xff]
    %v885 = vld [vmem:[%s883 + $0x8] sm:$0xff]
    %v886 = vld [vmem:[%s883 + $0x10] sm:$0xff]
    %v887 = vld [vmem:[%s883 + $0x18] sm:$0xff]
    %v888 = vld [vmem:[%s883 + $0x20] sm:$0xff]
    %v889 = vld [vmem:[%s883 + $0x28] sm:$0xff]
    %v890 = vld [vmem:[%s883 + $0x30] sm:$0xff]
    %v891 = vld [vmem:[%s883 + $0x38] sm:$0xff]
    %v892 = vld [vmem:[%s883 + $0x40] sm:$0xff]
    %v893 = vld [vmem:[%s883 + $0x48] sm:$0xff]
    %v894 = vld [vmem:[%s883 + $0x50] sm:$0xff]
    %v895 = vld [vmem:[%s883 + $0x58] sm:$0xff]
    %s896 = scalar_lea.vmem %s4, 8
    %v897 = vld [vmem:[%s896] sm:$0xff]
    %v898 = vperm.slane %v897, 0
    %v900 = vsel %vm49, %v872, 0
    %v903 = vsel %vm49, %v873, 0
    %905 = vmatpush.msra.mxu0 0.0
    %906 = vmatpush.msra.mxu0 0.0
    %907 = vmatpush.msra.mxu0 0.0
    %908 = vmatpush.msra.mxu0 0.0
    %909 = vmatpush.msra.mxu0 0.0
    %910 = vmatpush.msra.mxu0 0.0
    %911 = vmatpush.msra.mxu0 0.0
    %912 = vmatpush.msra.mxu0 0.0
    %913 = vmatpush.msra.mxu0 0.0
    %914 = vmatpush.msra.mxu0 0.0
    %915 = vmatpush.msra.mxu0 0.0
    %916 = vmatpush.msra.mxu0 0.0
    %917 = vmatpush.msra.mxu0 %v881
    %918 = vmatpush.msra.mxu0 %v879
    %919 = vmatpush.msra.mxu0 %v877
    %920 = vmatpush.msra.mxu0 %v875
    %921 = vmatmul.f32.gmra.mxu0 %v900
    %v922 = vpop.f32.mrf.mxu0
    %v923 = vadd.f32 %v898, %v922
    %924 = vmatmul.f32.gmra.mxu0 %v903
    %v925 = vpop.f32.mrf.mxu0
    %v926 = vadd.f32 %v898, %v925
    %927 = vdwg.mxu0
    %930 = vrot.lane.b32.xlu0 %v923, 96
    %v931 = vpop.permute.xlu0 %930
    %932 = vrot.lane.b32.xlu0 %v926, 96
    %v933 = vpop.permute.xlu0 %932
    %v934 = vsel %vm85, %v923, 0
    %v936 = vsel %vm85, %v926, 0
    %v938 = vsel %vm85, %v931, 0
    %v940 = vsel %vm85, %v933, 0
    %942 = vmatpush.xpose.msra.mxu0 0.0
    %943 = vmatpush.xpose.msra.mxu0 0.0
    %944 = vmatpush.xpose.msra.mxu0 0.0
    %945 = vmatpush.xpose.msra.mxu0 0.0
    %946 = vmatpush.xpose.msra.mxu0 0.0
    %947 = vmatpush.xpose.msra.mxu0 0.0
    %948 = vmatpush.xpose.msra.mxu0 0.0
    %949 = vmatpush.xpose.msra.mxu0 0.0
    %950 = vmatpush.xpose.msra.mxu0 0.0
    %951 = vmatpush.xpose.msra.mxu0 0.0
    %952 = vmatpush.xpose.msra.mxu0 0.0
    %953 = vmatpush.xpose.msra.mxu0 0.0
    %954 = vmatpush.xpose.msra.mxu0 0.0
    %955 = vmatpush.xpose.msra.mxu0 0.0
    %956 = vmatpush.xpose.msra.mxu0 %v940
    %957 = vmatpush.xpose.msra.mxu0 %v938
    %958 = vmatmul.f32.gmra.mxu0 %v934
    %v959 = vpop.f32.mrf.mxu0
    %v960 = vadd.f32 0.0, %v959
    %961 = vmatmul.f32.gmra.mxu0 %v936
    %v962 = vpop.f32.mrf.mxu0
    %v963 = vadd.f32 0.0, %v962
    %964 = vdwg.mxu0
    %v965 = vsel %vm25, %v960, -1e+30
    %v966 = vsel %vm26, %v963, -1e+30
    %v967 = vsel %vm119, %v965, -inf
    %968 = vmax.xlane.f32.xlu0 %v967
    %v969 = vpop.xlane.xlu0 %968
    %v970 = vsel %vm119, %v966, -inf
    %971 = vmax.xlane.f32.xlu0 %v970
    %v972 = vpop.xlane.xlu0 %971
    %v973 = vsub.f32 %v965, %v969
    %v974 = vsub.f32 %v966, %v972
    %v975 = vmul.f32 %v973, 1.442695
    %v976 = vpow.pop %v975
    %v977 = vmul.f32 %v974, 1.442695
    %v978 = vpow.pop %v977
    %v979 = vsel %vm119, %v976, 0.0
    %980 = vadd.xlane.f32.xlu0 %v979
    %v981 = vpop.xlane.xlu0 %980
    %v982 = vsel %vm119, %v978, 0.0
    %983 = vadd.xlane.f32.xlu0 %v982
    %v984 = vpop.xlane.xlu0 %983
    %v985 = vrcp.pop %v981
    %v986 = vmul.f32 %v981, %v985
    %v987 = vsub.f32 1.0, %v986
    %v988 = vmul.f32 %v985, %v987
    %v989 = vadd.f32 %v985, %v988
    %vm990 = vweird.f32 %v981
    %vm991 = vweird.f32 %v985
    %vm992 = vmor %vm990, %vm991
    %v993 = vsel %vm992, %v985, %v989
    %v994 = vand.u32 2147483647, %v981
    %vm995 = vcmp.eq.f32.partialorder %v994, 8.507059e+37
    %v996 = vand.u32 %v981, 2147483648
    %v997 = vor.u32 1.1754944e-38, %v996
    %v998 = vsel %vm995, %v997, %v993
    %v999 = vrcp.pop %v984
    %v1000 = vmul.f32 %v984, %v999
    %v1001 = vsub.f32 1.0, %v1000
    %v1002 = vmul.f32 %v999, %v1001
    %v1003 = vadd.f32 %v999, %v1002
    %vm1004 = vweird.f32 %v984
    %vm1005 = vweird.f32 %v999
    %vm1006 = vmor %vm1004, %vm1005
    %v1007 = vsel %vm1006, %v999, %v1003
    %v1008 = vand.u32 2147483647, %v984
    %vm1009 = vcmp.eq.f32.partialorder %v1008, 8.507059e+37
    %v1010 = vand.u32 %v984, 2147483648
    %v1011 = vor.u32 1.1754944e-38, %v1010
    %v1012 = vsel %vm1009, %v1011, %v1007
    %v1013 = vmul.f32 %v976, %v998
    %v1014 = vmul.f32 %v978, %v1012
    %1015 = vrot.lane.b32.xlu0 %v923, 64
    %v1016 = vpop.permute.xlu0 %1015
    %1017 = vrot.lane.b32.xlu0 %v926, 64
    %v1018 = vpop.permute.xlu0 %1017
    %v1022 = vsel %vm119, %v1013, 0
    %v1025 = vsel %vm119, %v1014, 0
    %1027 = vmatpush.msra.mxu0 0.0
    %1028 = vmatpush.msra.mxu0 0.0
    %1029 = vmatpush.msra.mxu0 0.0
    %1030 = vmatpush.msra.mxu0 0.0
    %1031 = vmatpush.msra.mxu0 0.0
    %1032 = vmatpush.msra.mxu0 0.0
    %1033 = vmatpush.msra.mxu0 0.0
    %1034 = vmatpush.msra.mxu0 0.0
    %1035 = vmatpush.msra.mxu0 0.0
    %1036 = vmatpush.msra.mxu0 0.0
    %1037 = vmatpush.msra.mxu0 0.0
    %1038 = vmatpush.msra.mxu0 0.0
    %1039 = vmatpush.msra.mxu0 0.0
    %1040 = vmatpush.msra.mxu0 0.0
    %1041 = vmatpush.msra.mxu0 %v1018
    %1042 = vmatpush.msra.mxu0 %v1016
    %1043 = vmatmul.f32.gmra.mxu0 %v1022
    %v1044 = vpop.f32.mrf.mxu0
    %v1045 = vadd.f32 0.0, %v1044
    %1046 = vmatmul.f32.gmra.mxu0 %v1025
    %v1047 = vpop.f32.mrf.mxu0
    %v1048 = vadd.f32 0.0, %v1047
    %1049 = vdwg.mxu0
    %1050 = vrot.lane.b32.xlu0 %v923, 120
    %v1051 = vpop.permute.xlu0 %1050
    %1052 = vrot.lane.b32.xlu0 %v926, 120
    %v1053 = vpop.permute.xlu0 %1052
    %1054 = vrot.lane.b32.xlu0 %v923, 88
    %v1055 = vpop.permute.xlu0 %1054
    %1056 = vrot.lane.b32.xlu0 %v926, 88
    %v1057 = vpop.permute.xlu0 %1056
    %v1058 = vsel %vm85, %v1051, 0
    %v1060 = vsel %vm85, %v1053, 0
    %v1062 = vsel %vm85, %v1055, 0
    %v1064 = vsel %vm85, %v1057, 0
    %1066 = vmatpush.xpose.msra.mxu0 0.0
    %1067 = vmatpush.xpose.msra.mxu0 0.0
    %1068 = vmatpush.xpose.msra.mxu0 0.0
    %1069 = vmatpush.xpose.msra.mxu0 0.0
    %1070 = vmatpush.xpose.msra.mxu0 0.0
    %1071 = vmatpush.xpose.msra.mxu0 0.0
    %1072 = vmatpush.xpose.msra.mxu0 0.0
    %1073 = vmatpush.xpose.msra.mxu0 0.0
    %1074 = vmatpush.xpose.msra.mxu0 0.0
    %1075 = vmatpush.xpose.msra.mxu0 0.0
    %1076 = vmatpush.xpose.msra.mxu0 0.0
    %1077 = vmatpush.xpose.msra.mxu0 0.0
    %1078 = vmatpush.xpose.msra.mxu0 0.0
    %1079 = vmatpush.xpose.msra.mxu0 0.0
    %1080 = vmatpush.xpose.msra.mxu0 %v1064
    %1081 = vmatpush.xpose.msra.mxu0 %v1062
    %1082 = vmatmul.f32.gmra.mxu0 %v1058
    %v1083 = vpop.f32.mrf.mxu0
    %v1084 = vadd.f32 0.0, %v1083
    %1085 = vmatmul.f32.gmra.mxu0 %v1060
    %v1086 = vpop.f32.mrf.mxu0
    %v1087 = vadd.f32 0.0, %v1086
    %1088 = vdwg.mxu0
    %v1089 = vsel %vm25, %v1084, -1e+30
    %v1090 = vsel %vm26, %v1087, -1e+30
    %v1091 = vsel %vm119, %v1089, -inf
    %1092 = vmax.xlane.f32.xlu0 %v1091
    %v1093 = vpop.xlane.xlu0 %1092
    %v1094 = vsel %vm119, %v1090, -inf
    %1095 = vmax.xlane.f32.xlu0 %v1094
    %v1096 = vpop.xlane.xlu0 %1095
    %v1097 = vsub.f32 %v1089, %v1093
    %v1098 = vsub.f32 %v1090, %v1096
    %v1099 = vmul.f32 %v1097, 1.442695
    %v1100 = vpow.pop %v1099
    %v1101 = vmul.f32 %v1098, 1.442695
    %v1102 = vpow.pop %v1101
    %v1103 = vsel %vm119, %v1100, 0.0
    %1104 = vadd.xlane.f32.xlu0 %v1103
    %v1105 = vpop.xlane.xlu0 %1104
    %v1106 = vsel %vm119, %v1102, 0.0
    %1107 = vadd.xlane.f32.xlu0 %v1106
    %v1108 = vpop.xlane.xlu0 %1107
    %v1109 = vrcp.pop %v1105
    %v1110 = vmul.f32 %v1105, %v1109
    %v1111 = vsub.f32 1.0, %v1110
    %v1112 = vmul.f32 %v1109, %v1111
    %v1113 = vadd.f32 %v1109, %v1112
    %vm1114 = vweird.f32 %v1105
    %vm1115 = vweird.f32 %v1109
    %vm1116 = vmor %vm1114, %vm1115
    %v1117 = vsel %vm1116, %v1109, %v1113
    %v1118 = vand.u32 2147483647, %v1105
    %vm1119 = vcmp.eq.f32.partialorder %v1118, 8.507059e+37
    %v1120 = vand.u32 %v1105, 2147483648
    %v1121 = vor.u32 1.1754944e-38, %v1120
    %v1122 = vsel %vm1119, %v1121, %v1117
    %v1123 = vrcp.pop %v1108
    %v1124 = vmul.f32 %v1108, %v1123
    %v1125 = vsub.f32 1.0, %v1124
    %v1126 = vmul.f32 %v1123, %v1125
    %v1127 = vadd.f32 %v1123, %v1126
    %vm1128 = vweird.f32 %v1108
    %vm1129 = vweird.f32 %v1123
    %vm1130 = vmor %vm1128, %vm1129
    %v1131 = vsel %vm1130, %v1123, %v1127
    %v1132 = vand.u32 2147483647, %v1108
    %vm1133 = vcmp.eq.f32.partialorder %v1132, 8.507059e+37
    %v1134 = vand.u32 %v1108, 2147483648
    %v1135 = vor.u32 1.1754944e-38, %v1134
    %v1136 = vsel %vm1133, %v1135, %v1131
    %v1137 = vmul.f32 %v1100, %v1122
    %v1138 = vmul.f32 %v1102, %v1136
    %1139 = vrot.lane.b32.xlu0 %v923, 56
    %v1140 = vpop.permute.xlu0 %1139
    %1141 = vrot.lane.b32.xlu0 %v926, 56
    %v1142 = vpop.permute.xlu0 %1141
    %v1146 = vsel %vm119, %v1137, 0
    %v1149 = vsel %vm119, %v1138, 0
    %1151 = vmatpush.msra.mxu0 0.0
    %1152 = vmatpush.msra.mxu0 0.0
    %1153 = vmatpush.msra.mxu0 0.0
    %1154 = vmatpush.msra.mxu0 0.0
    %1155 = vmatpush.msra.mxu0 0.0
    %1156 = vmatpush.msra.mxu0 0.0
    %1157 = vmatpush.msra.mxu0 0.0
    %1158 = vmatpush.msra.mxu0 0.0
    %1159 = vmatpush.msra.mxu0 0.0
    %1160 = vmatpush.msra.mxu0 0.0
    %1161 = vmatpush.msra.mxu0 0.0
    %1162 = vmatpush.msra.mxu0 0.0
    %1163 = vmatpush.msra.mxu0 0.0
    %1164 = vmatpush.msra.mxu0 0.0
    %1165 = vmatpush.msra.mxu0 %v1142
    %1166 = vmatpush.msra.mxu0 %v1140
    %1167 = vmatmul.f32.gmra.mxu0 %v1146
    %v1168 = vpop.f32.mrf.mxu0
    %v1169 = vadd.f32 0.0, %v1168
    %1170 = vmatmul.f32.gmra.mxu0 %v1149
    %v1171 = vpop.f32.mrf.mxu0
    %v1172 = vadd.f32 0.0, %v1171
    %1173 = vdwg.mxu0
    %1174 = vrot.lane.b32.xlu0 %v923, 112
    %v1175 = vpop.permute.xlu0 %1174
    %1176 = vrot.lane.b32.xlu0 %v926, 112
    %v1177 = vpop.permute.xlu0 %1176
    %1178 = vrot.lane.b32.xlu0 %v923, 80
    %v1179 = vpop.permute.xlu0 %1178
    %1180 = vrot.lane.b32.xlu0 %v926, 80
    %v1181 = vpop.permute.xlu0 %1180
    %v1182 = vsel %vm85, %v1175, 0
    %v1184 = vsel %vm85, %v1177, 0
    %v1186 = vsel %vm85, %v1179, 0
    %v1188 = vsel %vm85, %v1181, 0
    %1190 = vmatpush.xpose.msra.mxu0 0.0
    %1191 = vmatpush.xpose.msra.mxu0 0.0
    %1192 = vmatpush.xpose.msra.mxu0 0.0
    %1193 = vmatpush.xpose.msra.mxu0 0.0
    %1194 = vmatpush.xpose.msra.mxu0 0.0
    %1195 = vmatpush.xpose.msra.mxu0 0.0
    %1196 = vmatpush.xpose.msra.mxu0 0.0
    %1197 = vmatpush.xpose.msra.mxu0 0.0
    %1198 = vmatpush.xpose.msra.mxu0 0.0
    %1199 = vmatpush.xpose.msra.mxu0 0.0
    %1200 = vmatpush.xpose.msra.mxu0 0.0
    %1201 = vmatpush.xpose.msra.mxu0 0.0
    %1202 = vmatpush.xpose.msra.mxu0 0.0
    %1203 = vmatpush.xpose.msra.mxu0 0.0
    %1204 = vmatpush.xpose.msra.mxu0 %v1188
    %1205 = vmatpush.xpose.msra.mxu0 %v1186
    %1206 = vmatmul.f32.gmra.mxu0 %v1182
    %v1207 = vpop.f32.mrf.mxu0
    %v1208 = vadd.f32 0.0, %v1207
    %1209 = vmatmul.f32.gmra.mxu0 %v1184
    %v1210 = vpop.f32.mrf.mxu0
    %v1211 = vadd.f32 0.0, %v1210
    %1212 = vdwg.mxu0
    %v1213 = vsel %vm25, %v1208, -1e+30
    %v1214 = vsel %vm26, %v1211, -1e+30
    %v1215 = vsel %vm119, %v1213, -inf
    %1216 = vmax.xlane.f32.xlu0 %v1215
    %v1217 = vpop.xlane.xlu0 %1216
    %v1218 = vsel %vm119, %v1214, -inf
    %1219 = vmax.xlane.f32.xlu0 %v1218
    %v1220 = vpop.xlane.xlu0 %1219
    %v1221 = vsub.f32 %v1213, %v1217
    %v1222 = vsub.f32 %v1214, %v1220
    %v1223 = vmul.f32 %v1221, 1.442695
    %v1224 = vpow.pop %v1223
    %v1225 = vmul.f32 %v1222, 1.442695
    %v1226 = vpow.pop %v1225
    %v1227 = vsel %vm119, %v1224, 0.0
    %1228 = vadd.xlane.f32.xlu0 %v1227
    %v1229 = vpop.xlane.xlu0 %1228
    %v1230 = vsel %vm119, %v1226, 0.0
    %1231 = vadd.xlane.f32.xlu0 %v1230
    %v1232 = vpop.xlane.xlu0 %1231
    %v1233 = vrcp.pop %v1229
    %v1234 = vmul.f32 %v1229, %v1233
    %v1235 = vsub.f32 1.0, %v1234
    %v1236 = vmul.f32 %v1233, %v1235
    %v1237 = vadd.f32 %v1233, %v1236
    %vm1238 = vweird.f32 %v1229
    %vm1239 = vweird.f32 %v1233
    %vm1240 = vmor %vm1238, %vm1239
    %v1241 = vsel %vm1240, %v1233, %v1237
    %v1242 = vand.u32 2147483647, %v1229
    %vm1243 = vcmp.eq.f32.partialorder %v1242, 8.507059e+37
    %v1244 = vand.u32 %v1229, 2147483648
    %v1245 = vor.u32 1.1754944e-38, %v1244
    %v1246 = vsel %vm1243, %v1245, %v1241
    %v1247 = vrcp.pop %v1232
    %v1248 = vmul.f32 %v1232, %v1247
    %v1249 = vsub.f32 1.0, %v1248
    %v1250 = vmul.f32 %v1247, %v1249
    %v1251 = vadd.f32 %v1247, %v1250
    %vm1252 = vweird.f32 %v1232
    %vm1253 = vweird.f32 %v1247
    %vm1254 = vmor %vm1252, %vm1253
    %v1255 = vsel %vm1254, %v1247, %v1251
    %v1256 = vand.u32 2147483647, %v1232
    %vm1257 = vcmp.eq.f32.partialorder %v1256, 8.507059e+37
    %v1258 = vand.u32 %v1232, 2147483648
    %v1259 = vor.u32 1.1754944e-38, %v1258
    %v1260 = vsel %vm1257, %v1259, %v1255
    %v1261 = vmul.f32 %v1224, %v1246
    %v1262 = vmul.f32 %v1226, %v1260
    %1263 = vrot.lane.b32.xlu0 %v923, 48
    %v1264 = vpop.permute.xlu0 %1263
    %1265 = vrot.lane.b32.xlu0 %v926, 48
    %v1266 = vpop.permute.xlu0 %1265
    %v1270 = vsel %vm119, %v1261, 0
    %v1273 = vsel %vm119, %v1262, 0
    %1275 = vmatpush.msra.mxu0 0.0
    %1276 = vmatpush.msra.mxu0 0.0
    %1277 = vmatpush.msra.mxu0 0.0
    %1278 = vmatpush.msra.mxu0 0.0
    %1279 = vmatpush.msra.mxu0 0.0
    %1280 = vmatpush.msra.mxu0 0.0
    %1281 = vmatpush.msra.mxu0 0.0
    %1282 = vmatpush.msra.mxu0 0.0
    %1283 = vmatpush.msra.mxu0 0.0
    %1284 = vmatpush.msra.mxu0 0.0
    %1285 = vmatpush.msra.mxu0 0.0
    %1286 = vmatpush.msra.mxu0 0.0
    %1287 = vmatpush.msra.mxu0 0.0
    %1288 = vmatpush.msra.mxu0 0.0
    %1289 = vmatpush.msra.mxu0 %v1266
    %1290 = vmatpush.msra.mxu0 %v1264
    %1291 = vmatmul.f32.gmra.mxu0 %v1270
    %v1292 = vpop.f32.mrf.mxu0
    %v1293 = vadd.f32 0.0, %v1292
    %1294 = vmatmul.f32.gmra.mxu0 %v1273
    %v1295 = vpop.f32.mrf.mxu0
    %v1296 = vadd.f32 0.0, %v1295
    %1297 = vdwg.mxu0
    %1298 = vrot.lane.b32.xlu0 %v923, 104
    %v1299 = vpop.permute.xlu0 %1298
    %1300 = vrot.lane.b32.xlu0 %v926, 104
    %v1301 = vpop.permute.xlu0 %1300
    %1302 = vrot.lane.b32.xlu0 %v923, 72
    %v1303 = vpop.permute.xlu0 %1302
    %1304 = vrot.lane.b32.xlu0 %v926, 72
    %v1305 = vpop.permute.xlu0 %1304
    %v1306 = vsel %vm85, %v1299, 0
    %v1308 = vsel %vm85, %v1301, 0
    %v1310 = vsel %vm85, %v1303, 0
    %v1312 = vsel %vm85, %v1305, 0
    %1314 = vmatpush.xpose.msra.mxu0 0.0
    %1315 = vmatpush.xpose.msra.mxu0 0.0
    %1316 = vmatpush.xpose.msra.mxu0 0.0
    %1317 = vmatpush.xpose.msra.mxu0 0.0
    %1318 = vmatpush.xpose.msra.mxu0 0.0
    %1319 = vmatpush.xpose.msra.mxu0 0.0
    %1320 = vmatpush.xpose.msra.mxu0 0.0
    %1321 = vmatpush.xpose.msra.mxu0 0.0
    %1322 = vmatpush.xpose.msra.mxu0 0.0
    %1323 = vmatpush.xpose.msra.mxu0 0.0
    %1324 = vmatpush.xpose.msra.mxu0 0.0
    %1325 = vmatpush.xpose.msra.mxu0 0.0
    %1326 = vmatpush.xpose.msra.mxu0 0.0
    %1327 = vmatpush.xpose.msra.mxu0 0.0
    %1328 = vmatpush.xpose.msra.mxu0 %v1312
    %1329 = vmatpush.xpose.msra.mxu0 %v1310
    %1330 = vmatmul.f32.gmra.mxu0 %v1306
    %v1331 = vpop.f32.mrf.mxu0
    %v1332 = vadd.f32 0.0, %v1331
    %1333 = vmatmul.f32.gmra.mxu0 %v1308
    %v1334 = vpop.f32.mrf.mxu0
    %v1335 = vadd.f32 0.0, %v1334
    %1336 = vdwg.mxu0
    %v1337 = vsel %vm25, %v1332, -1e+30
    %v1338 = vsel %vm26, %v1335, -1e+30
    %v1339 = vsel %vm119, %v1337, -inf
    %1340 = vmax.xlane.f32.xlu0 %v1339
    %v1341 = vpop.xlane.xlu0 %1340
    %v1342 = vsel %vm119, %v1338, -inf
    %1343 = vmax.xlane.f32.xlu0 %v1342
    %v1344 = vpop.xlane.xlu0 %1343
    %v1345 = vsub.f32 %v1337, %v1341
    %v1346 = vsub.f32 %v1338, %v1344
    %v1347 = vmul.f32 %v1345, 1.442695
    %v1348 = vpow.pop %v1347
    %v1349 = vmul.f32 %v1346, 1.442695
    %v1350 = vpow.pop %v1349
    %v1351 = vsel %vm119, %v1348, 0.0
    %1352 = vadd.xlane.f32.xlu0 %v1351
    %v1353 = vpop.xlane.xlu0 %1352
    %v1354 = vsel %vm119, %v1350, 0.0
    %1355 = vadd.xlane.f32.xlu0 %v1354
    %v1356 = vpop.xlane.xlu0 %1355
    %v1357 = vrcp.pop %v1353
    %v1358 = vmul.f32 %v1353, %v1357
    %v1359 = vsub.f32 1.0, %v1358
    %v1360 = vmul.f32 %v1357, %v1359
    %v1361 = vadd.f32 %v1357, %v1360
    %vm1362 = vweird.f32 %v1353
    %vm1363 = vweird.f32 %v1357
    %vm1364 = vmor %vm1362, %vm1363
    %v1365 = vsel %vm1364, %v1357, %v1361
    %v1366 = vand.u32 2147483647, %v1353
    %vm1367 = vcmp.eq.f32.partialorder %v1366, 8.507059e+37
    %v1368 = vand.u32 %v1353, 2147483648
    %v1369 = vor.u32 1.1754944e-38, %v1368
    %v1370 = vsel %vm1367, %v1369, %v1365
    %v1371 = vrcp.pop %v1356
    %v1372 = vmul.f32 %v1356, %v1371
    %v1373 = vsub.f32 1.0, %v1372
    %v1374 = vmul.f32 %v1371, %v1373
    %v1375 = vadd.f32 %v1371, %v1374
    %vm1376 = vweird.f32 %v1356
    %vm1377 = vweird.f32 %v1371
    %vm1378 = vmor %vm1376, %vm1377
    %v1379 = vsel %vm1378, %v1371, %v1375
    %v1380 = vand.u32 2147483647, %v1356
    %vm1381 = vcmp.eq.f32.partialorder %v1380, 8.507059e+37
    %v1382 = vand.u32 %v1356, 2147483648
    %v1383 = vor.u32 1.1754944e-38, %v1382
    %v1384 = vsel %vm1381, %v1383, %v1379
    %v1385 = vmul.f32 %v1348, %v1370
    %v1386 = vmul.f32 %v1350, %v1384
    %1387 = vrot.lane.b32.xlu0 %v923, 40
    %v1388 = vpop.permute.xlu0 %1387
    %1389 = vrot.lane.b32.xlu0 %v926, 40
    %v1390 = vpop.permute.xlu0 %1389
    %v1394 = vsel %vm119, %v1385, 0
    %v1397 = vsel %vm119, %v1386, 0
    %1399 = vmatpush.msra.mxu0 0.0
    %1400 = vmatpush.msra.mxu0 0.0
    %1401 = vmatpush.msra.mxu0 0.0
    %1402 = vmatpush.msra.mxu0 0.0
    %1403 = vmatpush.msra.mxu0 0.0
    %1404 = vmatpush.msra.mxu0 0.0
    %1405 = vmatpush.msra.mxu0 0.0
    %1406 = vmatpush.msra.mxu0 0.0
    %1407 = vmatpush.msra.mxu0 0.0
    %1408 = vmatpush.msra.mxu0 0.0
    %1409 = vmatpush.msra.mxu0 0.0
    %1410 = vmatpush.msra.mxu0 0.0
    %1411 = vmatpush.msra.mxu0 0.0
    %1412 = vmatpush.msra.mxu0 0.0
    %1413 = vmatpush.msra.mxu0 %v1390
    %1414 = vmatpush.msra.mxu0 %v1388
    %1415 = vmatmul.f32.gmra.mxu0 %v1394
    %v1416 = vpop.f32.mrf.mxu0
    %v1417 = vadd.f32 0.0, %v1416
    %1418 = vmatmul.f32.gmra.mxu0 %v1397
    %v1419 = vpop.f32.mrf.mxu0
    %v1420 = vadd.f32 0.0, %v1419
    %1421 = vdwg.mxu0
    %1424 = vrot.lane.b32.xlu0 %v1169, 8
    %v1425 = vpop.permute.xlu0 %1424
    %1426 = vrot.lane.b32.xlu0 %v1172, 8
    %v1427 = vpop.permute.xlu0 %1426
    %1432 = vrot.lane.b32.xlu0 %v1293, 16
    %v1433 = vpop.permute.xlu0 %1432
    %1434 = vrot.lane.b32.xlu0 %v1296, 16
    %v1435 = vpop.permute.xlu0 %1434
    %1440 = vrot.lane.b32.xlu0 %v1417, 24
    %v1441 = vpop.permute.xlu0 %1440
    %1442 = vrot.lane.b32.xlu0 %v1420, 24
    %v1443 = vpop.permute.xlu0 %1442
    %v1446 = vsel %vm85, %v1045, %v1425
    %v1447 = vsel %vm85, %v1048, %v1427
    %v1448 = vsel %vm119, %v1446, %v1433
    %v1449 = vsel %vm119, %v1447, %v1435
    %v1450 = vsel %vm603, %v1448, %v1441
    %v1451 = vsel %vm603, %v1449, %v1443
    %v1452 = vperm.slane %v897, 1
    %v1454 = vsel %vm49, %v1450, 0
    %v1457 = vsel %vm49, %v1451, 0
    %1459 = vmatpush.msra.mxu0 0.0
    %1460 = vmatpush.msra.mxu0 0.0
    %1461 = vmatpush.msra.mxu0 0.0
    %1462 = vmatpush.msra.mxu0 0.0
    %1463 = vmatpush.msra.mxu0 0.0
    %1464 = vmatpush.msra.mxu0 0.0
    %1465 = vmatpush.msra.mxu0 0.0
    %1466 = vmatpush.msra.mxu0 0.0
    %1467 = vmatpush.msra.mxu0 0.0
    %1468 = vmatpush.msra.mxu0 0.0
    %1469 = vmatpush.msra.mxu0 0.0
    %1470 = vmatpush.msra.mxu0 0.0
    %1471 = vmatpush.msra.mxu0 %v895
    %1472 = vmatpush.msra.mxu0 %v894
    %1473 = vmatpush.msra.mxu0 %v893
    %1474 = vmatpush.msra.mxu0 %v892
    %1475 = vmatmul.f32.gmra.mxu0 %v1454
    %v1476 = vpop.f32.mrf.mxu0
    %v1477 = vadd.f32 %v1452, %v1476
    %1478 = vmatmul.f32.gmra.mxu0 %v1457
    %v1479 = vpop.f32.mrf.mxu0
    %v1480 = vadd.f32 %v1452, %v1479
    %1481 = vdwg.mxu0
    %v1482 = vadd.f32 %v872, %v1477
    %v1483 = vadd.f32 %v873, %v1480
    %v1484 = vsel %vm49, %v1482, 0.0
    %1485 = vadd.xlane.f32.xlu0 %v1484
    %v1486 = vpop.xlane.xlu0 %1485
    %v1487 = vsel %vm49, %v1483, 0.0
    %1488 = vadd.xlane.f32.xlu0 %v1487
    %v1489 = vpop.xlane.xlu0 %1488
    %v1490 = vmul.f32 %v1486, %v650
    %v1491 = vmul.f32 %v1489, %v650
    %v1492 = vsub.f32 %v1482, %v1490
    %v1493 = vsub.f32 %v1483, %v1491
    %v1494 = vmul.f32 %v1492, %v1492
    %v1495 = vmul.f32 %v1493, %v1493
    %v1496 = vsel %vm49, %v1494, 0.0
    %1497 = vadd.xlane.f32.xlu0 %v1496
    %v1498 = vpop.xlane.xlu0 %1497
    %v1499 = vsel %vm49, %v1495, 0.0
    %1500 = vadd.xlane.f32.xlu0 %v1499
    %v1501 = vpop.xlane.xlu0 %1500
    %v1502 = vmul.f32 %v1498, %v650
    %v1503 = vmul.f32 %v1501, %v650
    %v1504 = vadd.f32 %v1502, 1e-05
    %v1505 = vadd.f32 %v1503, 1e-05
    %v1506 = vrsqrt.pop %v1504
    %v1507 = vmul.f32 %v1506, %v1504
    %v1508 = vmul.f32 %v1507, %v1506
    %v1509 = vmul.f32 0.5, %v1508
    %v1510 = vsub.f32 1.5, %v1509
    %v1511 = vmul.f32 %v1506, %v1510
    %v1512 = vmul.f32 %v1504, %v1511
    %vm1513 = vcmp.eq.f32.partialorder %v1504, inf
    %v1514 = vsel %vm1513, %v1504, %v1512
    %vm1515 = vcmp.eq.f32.partialorder %v1504, 0.0
    %v1516 = vand.u32 %v1504, 2147483648
    %v1517 = vsel %vm1515, %v1516, %v1514
    %v1518 = vrsqrt.pop %v1505
    %v1519 = vmul.f32 %v1518, %v1505
    %v1520 = vmul.f32 %v1519, %v1518
    %v1521 = vmul.f32 0.5, %v1520
    %v1522 = vsub.f32 1.5, %v1521
    %v1523 = vmul.f32 %v1518, %v1522
    %v1524 = vmul.f32 %v1505, %v1523
    %vm1525 = vcmp.eq.f32.partialorder %v1505, inf
    %v1526 = vsel %vm1525, %v1505, %v1524
    %vm1527 = vcmp.eq.f32.partialorder %v1505, 0.0
    %v1528 = vand.u32 %v1505, 2147483648
    %v1529 = vsel %vm1527, %v1528, %v1526
    %v1530 = vrcp.pop %v1517
    %v1531 = vmul.f32 %v1517, %v1530
    %v1532 = vsub.f32 1.0, %v1531
    %v1533 = vmul.f32 %v1530, %v1532
    %v1534 = vadd.f32 %v1530, %v1533
    %vm1535 = vweird.f32 %v1517
    %vm1536 = vweird.f32 %v1530
    %vm1537 = vmor %vm1535, %vm1536
    %v1538 = vsel %vm1537, %v1530, %v1534
    %v1539 = vand.u32 2147483647, %v1517
    %vm1540 = vcmp.eq.f32.partialorder %v1539, 8.507059e+37
    %v1541 = vand.u32 %v1517, 2147483648
    %v1542 = vor.u32 1.1754944e-38, %v1541
    %v1543 = vsel %vm1540, %v1542, %v1538
    %v1544 = vmul.f32 %v1492, %v1543
    %v1545 = vrcp.pop %v1529
    %v1546 = vmul.f32 %v1529, %v1545
    %v1547 = vsub.f32 1.0, %v1546
    %v1548 = vmul.f32 %v1545, %v1547
    %v1549 = vadd.f32 %v1545, %v1548
    %vm1550 = vweird.f32 %v1529
    %vm1551 = vweird.f32 %v1545
    %vm1552 = vmor %vm1550, %vm1551
    %v1553 = vsel %vm1552, %v1545, %v1549
    %v1554 = vand.u32 2147483647, %v1529
    %vm1555 = vcmp.eq.f32.partialorder %v1554, 8.507059e+37
    %v1556 = vand.u32 %v1529, 2147483648
    %v1557 = vor.u32 1.1754944e-38, %v1556
    %v1558 = vsel %vm1555, %v1557, %v1553
    %v1559 = vmul.f32 %v1493, %v1558
    %v1560 = vperm.slane %v897, 2
    %v1561 = vmul.f32 %v1544, %v1560
    %v1562 = vmul.f32 %v1559, %v1560
    %v1563 = vperm.slane %v897, 3
    %v1564 = vadd.f32 %v1561, %v1563
    %v1565 = vadd.f32 %v1562, %v1563
    %v1566 = vperm.slane %v897, 4
    %v1568 = vsel %vm49, %v1564, 0
    %v1571 = vsel %vm49, %v1565, 0
    %1573 = vmatpush.msra.mxu0 0.0
    %1574 = vmatpush.msra.mxu0 0.0
    %1575 = vmatpush.msra.mxu0 0.0
    %1576 = vmatpush.msra.mxu0 0.0
    %1577 = vmatpush.msra.mxu0 0.0
    %1578 = vmatpush.msra.mxu0 0.0
    %1579 = vmatpush.msra.mxu0 0.0
    %1580 = vmatpush.msra.mxu0 0.0
    %1581 = vmatpush.msra.mxu0 0.0
    %1582 = vmatpush.msra.mxu0 0.0
    %1583 = vmatpush.msra.mxu0 0.0
    %1584 = vmatpush.msra.mxu0 0.0
    %1585 = vmatpush.msra.mxu0 %v882
    %1586 = vmatpush.msra.mxu0 %v880
    %1587 = vmatpush.msra.mxu0 %v878
    %1588 = vmatpush.msra.mxu0 %v876
    %1589 = vmatmul.f32.gmra.mxu0 %v1568
    %v1590 = vpop.f32.mrf.mxu0
    %v1591 = vadd.f32 %v1566, %v1590
    %1592 = vmatmul.f32.gmra.mxu0 %v1571
    %v1593 = vpop.f32.mrf.mxu0
    %v1594 = vadd.f32 %v1566, %v1593
    %1595 = vdwg.mxu0
    %v1596 = vmax.f32 %v1591, 0.0
    %v1597 = vmax.f32 %v1594, 0.0
    %v1598 = vperm.slane %v897, 5
    %v1600 = vsel %vm760, %v1596, 0
    %v1603 = vsel %vm760, %v1597, 0
    %1605 = vmatpush.msra.mxu0 0.0
    %1606 = vmatpush.msra.mxu0 0.0
    %1607 = vmatpush.msra.mxu0 0.0
    %1608 = vmatpush.msra.mxu0 0.0
    %1609 = vmatpush.msra.mxu0 0.0
    %1610 = vmatpush.msra.mxu0 0.0
    %1611 = vmatpush.msra.mxu0 0.0
    %1612 = vmatpush.msra.mxu0 0.0
    %1613 = vmatpush.msra.mxu0 %v891
    %1614 = vmatpush.msra.mxu0 %v890
    %1615 = vmatpush.msra.mxu0 %v889
    %1616 = vmatpush.msra.mxu0 %v888
    %1617 = vmatpush.msra.mxu0 %v887
    %1618 = vmatpush.msra.mxu0 %v886
    %1619 = vmatpush.msra.mxu0 %v885
    %1620 = vmatpush.msra.mxu0 %v884
    %1621 = vmatmul.f32.gmra.mxu0 %v1600
    %v1622 = vpop.f32.mrf.mxu0
    %v1623 = vadd.f32 %v1598, %v1622
    %1624 = vmatmul.f32.gmra.mxu0 %v1603
    %v1625 = vpop.f32.mrf.mxu0
    %v1626 = vadd.f32 %v1598, %v1625
    %1627 = vdwg.mxu0
    %v1628 = vadd.f32 %v1564, %v1623
    %v1629 = vadd.f32 %v1565, %v1626
    %v1630 = vsel %vm49, %v1628, 0.0
    %1631 = vadd.xlane.f32.xlu0 %v1630
    %v1632 = vpop.xlane.xlu0 %1631
    %v1633 = vsel %vm49, %v1629, 0.0
    %1634 = vadd.xlane.f32.xlu0 %v1633
    %v1635 = vpop.xlane.xlu0 %1634
    %v1636 = vmul.f32 %v1632, %v650
    %v1637 = vmul.f32 %v1635, %v650
    %v1638 = vsub.f32 %v1628, %v1636
    %v1639 = vsub.f32 %v1629, %v1637
    %v1640 = vmul.f32 %v1638, %v1638
    %v1641 = vmul.f32 %v1639, %v1639
    %v1642 = vsel %vm49, %v1640, 0.0
    %1643 = vadd.xlane.f32.xlu0 %v1642
    %v1644 = vpop.xlane.xlu0 %1643
    %v1645 = vsel %vm49, %v1641, 0.0
    %1646 = vadd.xlane.f32.xlu0 %v1645
    %v1647 = vpop.xlane.xlu0 %1646
    %v1648 = vmul.f32 %v1644, %v650
    %v1649 = vmul.f32 %v1647, %v650
    %v1650 = vadd.f32 %v1648, 1e-05
    %v1651 = vadd.f32 %v1649, 1e-05
    %v1652 = vrsqrt.pop %v1650
    %v1653 = vmul.f32 %v1652, %v1650
    %v1654 = vmul.f32 %v1653, %v1652
    %v1655 = vmul.f32 0.5, %v1654
    %v1656 = vsub.f32 1.5, %v1655
    %v1657 = vmul.f32 %v1652, %v1656
    %v1658 = vmul.f32 %v1650, %v1657
    %vm1659 = vcmp.eq.f32.partialorder %v1650, inf
    %v1660 = vsel %vm1659, %v1650, %v1658
    %vm1661 = vcmp.eq.f32.partialorder %v1650, 0.0
    %v1662 = vand.u32 %v1650, 2147483648
    %v1663 = vsel %vm1661, %v1662, %v1660
    %v1664 = vrsqrt.pop %v1651
    %v1665 = vmul.f32 %v1664, %v1651
    %v1666 = vmul.f32 %v1665, %v1664
    %v1667 = vmul.f32 0.5, %v1666
    %v1668 = vsub.f32 1.5, %v1667
    %v1669 = vmul.f32 %v1664, %v1668
    %v1670 = vmul.f32 %v1651, %v1669
    %vm1671 = vcmp.eq.f32.partialorder %v1651, inf
    %v1672 = vsel %vm1671, %v1651, %v1670
    %vm1673 = vcmp.eq.f32.partialorder %v1651, 0.0
    %v1674 = vand.u32 %v1651, 2147483648
    %v1675 = vsel %vm1673, %v1674, %v1672
    %v1676 = vrcp.pop %v1663
    %v1677 = vmul.f32 %v1663, %v1676
    %v1678 = vsub.f32 1.0, %v1677
    %v1679 = vmul.f32 %v1676, %v1678
    %v1680 = vadd.f32 %v1676, %v1679
    %vm1681 = vweird.f32 %v1663
    %vm1682 = vweird.f32 %v1676
    %vm1683 = vmor %vm1681, %vm1682
    %v1684 = vsel %vm1683, %v1676, %v1680
    %v1685 = vand.u32 2147483647, %v1663
    %vm1686 = vcmp.eq.f32.partialorder %v1685, 8.507059e+37
    %v1687 = vand.u32 %v1663, 2147483648
    %v1688 = vor.u32 1.1754944e-38, %v1687
    %v1689 = vsel %vm1686, %v1688, %v1684
    %v1690 = vmul.f32 %v1638, %v1689
    %v1691 = vrcp.pop %v1675
    %v1692 = vmul.f32 %v1675, %v1691
    %v1693 = vsub.f32 1.0, %v1692
    %v1694 = vmul.f32 %v1691, %v1693
    %v1695 = vadd.f32 %v1691, %v1694
    %vm1696 = vweird.f32 %v1675
    %vm1697 = vweird.f32 %v1691
    %vm1698 = vmor %vm1696, %vm1697
    %v1699 = vsel %vm1698, %v1691, %v1695
    %v1700 = vand.u32 2147483647, %v1675
    %vm1701 = vcmp.eq.f32.partialorder %v1700, 8.507059e+37
    %v1702 = vand.u32 %v1675, 2147483648
    %v1703 = vor.u32 1.1754944e-38, %v1702
    %v1704 = vsel %vm1701, %v1703, %v1699
    %v1705 = vmul.f32 %v1639, %v1704
    %v1706 = vperm.slane %v897, 6
    %v1707 = vmul.f32 %v1690, %v1706
    %v1708 = vmul.f32 %v1705, %v1706
    %v1709 = vperm.slane %v897, 7
    %v1710 = vadd.f32 %v1707, %v1709
    %v1711 = vadd.f32 %v1708, %v1709
    %1712 = vst.msk [vmem:[#allocation2] sm:$0xff] %vm49, %v1710
    %1713 = vst.msk [vmem:[#allocation2 + $0x8] sm:$0xff] %vm49, %v1711
    // Predicated region
    $region22: #{transformer_encoder_forward.1} parent=1 // pred_check
      _
    $region23: #{transformer_encoder_forward.1} parent=1 // pred_check_branch
      %1715 = sbr.rel (0) target = $region25
    $region24: #{transformer_encoder_forward.1} parent=1 // pred_region
      %1717 = vsyncadd [#allocation3], 0
      %s1718 = sshll.u32 [#allocation2], 4
      %s1719 = int_to_ptr.vmem [resolvable:$true] %s1718
      %s1720 = sshll.u32 %s5, 4
      %s1721 = int_to_ptr.hbm [resolvable:$true] %s1720
      %1726 = dma.vmem_to_hbm [thread:$0]  %s1719, 256, %s1721, [#allocation3], 128, 128, 8
    $region25: #{transformer_encoder_forward.1} parent=1 // pred_fallthru
      _
    // Predicated region
    $region26: #{transformer_encoder_forward.1} parent=1 // pred_check
      _
    $region27: #{transformer_encoder_forward.1} parent=1 // pred_check_branch
      %1728 = sbr.rel (0) target = $region29
    $region28: #{transformer_encoder_forward.1} parent=1 // pred_region
      %1730 = dma.done [#allocation3], 256
    $region29: #{transformer_encoder_forward.1} parent=1 // pred_fallthru
      _
    %1731 = vsyncpa [#allocation3], 1

</llo_original>
